<compile_context>
chip_gen: v7x
topology: tpu7x:2x2x1
jax: 0.10.0
libtpu: 0.0.40
codegen_flags: <defaults>
</compile_context>

<pallas_src>
import numpy as np
import jax
import jax.numpy as jnp
from jax.experimental import pallas as pl
from jax.experimental.pallas import tpu as pltpu


def _round_up(x, m):
    return ((x + m - 1) // m) * m


def _cdiv(a, b):
    return -(-a // b)


TB_MAX = 1024                          # max rows per batch tile (mem-bound sweet spot)
VMEM_LIMIT_BYTES = 32 * 1024 * 1024    # explicit scoped-VMEM budget, safe on v5e/v6e/v7x


# ----------------------------------------------------------------------------
# Pallas kernel: fused 4-layer MLP + control-position pass-through
# ----------------------------------------------------------------------------
def _decoder_kernel(y_ref, m_ref, w1_ref, b1_ref, w2_ref, b2_ref,
                    w3_ref, b3_ref, w4_ref, b4_ref, o_ref):
    ctrl = m_ref[...] > 0.5                                  # (1, P), broadcasts over rows
    # Zero control columns before layer 1 (the zero-padded w1 rows would turn a
    # non-finite control input into NaN via 0*Inf) and cast straight to bf16 so
    # the f32 input value is not kept live across the four matmuls.
    y_in = jnp.where(ctrl, 0.0, y_ref[...]).astype(jnp.bfloat16)
    # bf16 operands feed the MXU, f32 accumulation via preferred_element_type;
    # bias add / ReLU epilogue stays in f32 (v5e has no bf16 VPU datapath).
    h = jnp.dot(y_in, w1_ref[...],
                preferred_element_type=jnp.float32) + b1_ref[...]
    h = jnp.maximum(h, 0.0)
    h = jnp.dot(h.astype(jnp.bfloat16), w2_ref[...],
                preferred_element_type=jnp.float32) + b2_ref[...]
    h = jnp.maximum(h, 0.0)
    h = jnp.dot(h.astype(jnp.bfloat16), w3_ref[...],
                preferred_element_type=jnp.float32) + b3_ref[...]
    h = jnp.maximum(h, 0.0)
    h = jnp.dot(h.astype(jnp.bfloat16), w4_ref[...],
                preferred_element_type=jnp.float32) + b4_ref[...]
    # Control positions pass the input straight through; re-read the resident
    # VMEM input block here instead of holding it in vregs across the matmuls.
    o_ref[...] = jnp.where(ctrl, y_ref[...], h).astype(o_ref.dtype)


def _resident_spec(arr, single_buffered):
    # Whole-array block, same block every grid step -> stays VMEM-resident.
    zeros = (0,) * arr.ndim
    if single_buffered:
        # Constant index_map: the block is never re-fetched, so a second
        # pipeline buffer is dead VMEM -> keep a single buffer.
        return pl.BlockSpec(arr.shape, lambda i, _z=zeros: _z,
                            pipeline_mode=pl.Buffered(1))
    return pl.BlockSpec(arr.shape, lambda i, _z=zeros: _z)


def _build_call(Bp, P, tb, resident, optimized):
    kwargs = {}
    if optimized:
        # In/out tiles have identical shape, dtype and index map, and each
        # block is read before its slot is written back -> safe to alias.
        kwargs["input_output_aliases"] = {0: 0}
    return pl.pallas_call(
        _decoder_kernel,
        out_shape=jax.ShapeDtypeStruct((Bp, P), jnp.float32),
        grid=(Bp // tb,),
        in_specs=[pl.BlockSpec((tb, P), lambda i: (i, 0))]
                 + [_resident_spec(a, optimized) for a in resident],
        out_specs=pl.BlockSpec((tb, P), lambda i: (i, 0)),
        compiler_params=pltpu.CompilerParams(
            dimension_semantics=("parallel",),   # shard batch tiles on v7x's 2 TCs
            vmem_limit_bytes=VMEM_LIMIT_BYTES),
        **kwargs,
    )


def decoder_pallas(y_pad, ctrl_mask, kp, *, tb):
    """y_pad: (Bp, P) f32 with Bp % tb == 0; kp: dict of padded bf16 weights / f32 biases."""
    Bp, P = y_pad.shape
    assert Bp % tb == 0 and tb % 8 == 0 and P % 128 == 0
    resident = (ctrl_mask, kp["w1"], kp["b1"], kp["w2"], kp["b2"],
                kp["w3"], kp["b3"], kp["w4"], kp["b4"])
    try:
        return _build_call(Bp, P, tb, resident, optimized=True)(y_pad, *resident)
    except Exception:
        # Fallback for jax versions without pipeline_mode / aliasing support:
        # default double-buffered resident blocks, identical semantics.
        return _build_call(Bp, P, tb, resident, optimized=False)(y_pad, *resident)


def _choose_tiling(B):
    """Pick (tb, Bp): pad B only to a multiple of 8, keep tiles <= TB_MAX, and
    guarantee >= 2 grid steps whenever there are >= 2 sublane tiles of rows so
    the "parallel" axis can feed both v7x TensorCores."""
    B8 = _round_up(B, 8)
    n = max(_cdiv(B8, TB_MAX), 2 if B8 >= 16 else 1)
    tb = _round_up(_cdiv(B8, n), 8)
    Bp = tb * n
    return tb, Bp


# ----------------------------------------------------------------------------
# Decoder forward (matches the PyTorch module semantics)
# ----------------------------------------------------------------------------
class DecoderPallas:
    def __init__(self, nxny, M, hidden_dim, P, control_indices, key):
        assert P == nxny, "reference module indexes y (P cols) with an nxny-long mask"
        assert len(control_indices) == M
        self.nxny = nxny
        self.M = M
        self.P = P
        self.hidden_dim = hidden_dim
        self.control_indices = np.asarray(control_indices, dtype=np.int32)
        assert len(np.unique(self.control_indices)) == M
        assert self.control_indices.min() >= 0 and self.control_indices.max() < nxny

        mask = np.ones(nxny, dtype=bool)
        mask[self.control_indices] = False
        self.non_control_indices = np.where(mask)[0].astype(np.int32)

        # deterministic parameter init (mimics nn.Linear uniform bounds);
        # weights stored (in, out)
        dims = [(P - M, hidden_dim), (hidden_dim, hidden_dim),
                (hidden_dim, hidden_dim), (hidden_dim, nxny - M)]
        keys = jax.random.split(key, 2 * len(dims))
        w_f32, b_f32 = [], []
        for i, (din, dout) in enumerate(dims):
            bound = 1.0 / np.sqrt(din)
            w_f32.append(jax.random.uniform(keys[2 * i], (din, dout),
                                            jnp.float32, -bound, bound))
            b_f32.append(jax.random.uniform(keys[2 * i + 1], (1, dout),
                                            jnp.float32, -bound, bound))

        # unpadded bf16 weights / f32 biases: used by the plain-JAX reference
        self.params_ref = {}
        for i in range(4):
            self.params_ref[f"w{i+1}"] = w_f32[i].astype(jnp.bfloat16)
            self.params_ref[f"b{i+1}"] = b_f32[i]

        # fold the static column selection into zero-padded kernel weights:
        #   w1: zero rows at control positions  -> (P, H)
        #   w4/b4: zero cols at control positions -> (H, P) / (1, P)
        nci = jnp.asarray(self.non_control_indices)
        w1p = jnp.zeros((P, hidden_dim), jnp.float32).at[nci, :].set(w_f32[0])
        w4p = jnp.zeros((hidden_dim, nxny), jnp.float32).at[:, nci].set(w_f32[3])
        b4p = jnp.zeros((1, nxny), jnp.float32).at[:, nci].set(b_f32[3])
        self.kernel_params = {
            "w1": w1p.astype(jnp.bfloat16), "b1": b_f32[0],
            "w2": w_f32[1].astype(jnp.bfloat16), "b2": b_f32[1],
            "w3": w_f32[2].astype(jnp.bfloat16), "b3": b_f32[2],
            "w4": w4p.astype(jnp.bfloat16), "b4": b4p,
        }
        self.ctrl_mask = (jnp.zeros((1, nxny), jnp.float32)
                          .at[0, jnp.asarray(self.control_indices)].set(1.0))

        # VMEM budget: resident operands (x2 to cover the double-buffered
        # fallback path) + double-buffered in/out tiles at the largest tile.
        resident_bytes = sum(int(np.prod(a.shape)) * a.dtype.itemsize
                             for a in list(self.kernel_params.values())
                             + [self.ctrl_mask])
        tile_bytes = 2 * 2 * TB_MAX * P * 4
        assert 2 * resident_bytes + tile_bytes < VMEM_LIMIT_BYTES

    def __call__(self, y):
        # TODO(synk): if the decoder is called per-timestep, flatten (T, B, P)
        # -> (T*B, P) at the call site so one pallas_call amortizes the launch
        # and the ~190 KiB of resident bf16 weights over many rows.
        B, P = y.shape
        assert P == self.P
        tb, Bp = _choose_tiling(B)
        if Bp != B:
            y = jnp.concatenate([y, jnp.zeros((Bp - B, P), y.dtype)], axis=0)
        out = decoder_pallas(y, self.ctrl_mask, self.kernel_params, tb=tb)
        return out[:B]   # drop zero-padded rows (they carry MLP garbage)


# ----------------------------------------------------------------------------
# Reference (plain JAX, original gather/MLP/scatter semantics) for correctness
# ----------------------------------------------------------------------------
def decoder_ref(dec, y):
    p = dec.params_ref
    f32 = lambda a: a.astype(jnp.float32)
    bf = lambda a: a.astype(jnp.bfloat16).astype(jnp.float32)  # mimic MXU bf16 inputs
    h = y[:, dec.non_control_indices]
    h = jnp.maximum(bf(h) @ f32(p["w1"]) + p["b1"], 0.0)
    h = jnp.maximum(bf(h) @ f32(p["w2"]) + p["b2"], 0.0)
    h = jnp.maximum(bf(h) @ f32(p["w3"]) + p["b3"], 0.0)
    h = bf(h) @ f32(p["w4"]) + p["b4"]
    x = jnp.zeros((y.shape[0], dec.nxny), dtype=y.dtype)
    x = x.at[:, dec.control_indices].set(y[:, dec.control_indices])
    x = x.at[:, dec.non_control_indices].set(h)
    return x


if __name__ == "__main__":
    key = jax.random.PRNGKey(0)
    k_param, k_in1, k_in2 = jax.random.split(key, 3)

    # shapes implied by the module: spatial grid 16x16 -> nxny = P = 256
    nxny = 16 * 16
    P = nxny
    M = 8
    hidden_dim = 128
    control_indices = np.array([3, 17, 42, 77, 100, 150, 200, 255], dtype=np.int32)

    dec = DecoderPallas(nxny, M, hidden_dim, P, control_indices, k_param)

    # Case 1: tiny batch (single 8-row tile, grid=1).
    y1 = jax.random.normal(k_in1, (4, P), dtype=jnp.float32)
    out1 = jax.block_until_ready(dec(y1))
    np.testing.assert_allclose(np.asarray(out1), np.asarray(decoder_ref(dec, y1)),
                               rtol=1e-2, atol=1e-2)

    # Case 2: non-multiple-of-8 batch -> exercises padding + >=2 grid steps
    # (the path that shards across both v7x TensorCores).
    y2 = jax.random.normal(k_in2, (37, P), dtype=jnp.float32)
    out2 = jax.block_until_ready(dec(y2))
    np.testing.assert_allclose(np.asarray(out2), np.asarray(decoder_ref(dec, y2)),
                               rtol=1e-2, atol=1e-2)

    print("KERNEL_OK")
</pallas_src>

<mosaic_0001>
module attributes {stable_mosaic.version = 11 : i64} {
  func.func @_decoder_kernel(%arg0: i32, %arg1: memref<8x256xf32, #tpu.memory_space<vmem>>, %arg2: memref<1x256xf32, #tpu.memory_space<vmem>>, %arg3: memref<256x128xbf16, #tpu.memory_space<vmem>>, %arg4: memref<1x128xf32, #tpu.memory_space<vmem>>, %arg5: memref<128x128xbf16, #tpu.memory_space<vmem>>, %arg6: memref<1x128xf32, #tpu.memory_space<vmem>>, %arg7: memref<128x128xbf16, #tpu.memory_space<vmem>>, %arg8: memref<1x128xf32, #tpu.memory_space<vmem>>, %arg9: memref<128x256xbf16, #tpu.memory_space<vmem>>, %arg10: memref<1x256xf32, #tpu.memory_space<vmem>>, %arg11: memref<8x256xf32, #tpu.memory_space<vmem>>) attributes {dimension_semantics = [#tpu.dimension_semantics<parallel>], iteration_bounds = array<i64: 1>, scalar_prefetch = 0 : i64, scratch_operands = 0 : i64, tpu.core_type = #tpu.core_type<tc>, window_params = [{transform_indices = @transform_0, window_bounds = array<i64: 8, 256>}, {pipeline_mode = #tpu.pipeline_mode<synchronous>, transform_indices = @transform_1, window_bounds = array<i64: 1, 256>}, {pipeline_mode = #tpu.pipeline_mode<synchronous>, transform_indices = @transform_2, window_bounds = array<i64: 256, 128>}, {pipeline_mode = #tpu.pipeline_mode<synchronous>, transform_indices = @transform_3, window_bounds = array<i64: 1, 128>}, {pipeline_mode = #tpu.pipeline_mode<synchronous>, transform_indices = @transform_4, window_bounds = array<i64: 128, 128>}, {pipeline_mode = #tpu.pipeline_mode<synchronous>, transform_indices = @transform_5, window_bounds = array<i64: 1, 128>}, {pipeline_mode = #tpu.pipeline_mode<synchronous>, transform_indices = @transform_6, window_bounds = array<i64: 128, 128>}, {pipeline_mode = #tpu.pipeline_mode<synchronous>, transform_indices = @transform_7, window_bounds = array<i64: 1, 128>}, {pipeline_mode = #tpu.pipeline_mode<synchronous>, transform_indices = @transform_8, window_bounds = array<i64: 128, 256>}, {pipeline_mode = #tpu.pipeline_mode<synchronous>, transform_indices = @transform_9, window_bounds = array<i64: 1, 256>}, {transform_indices = @transform_10, window_bounds = array<i64: 8, 256>}]} {
    %c0 = arith.constant 0 : index
    %c0_0 = arith.constant 0 : index
    %0 = vector.load %arg2[%c0, %c0_0] : memref<1x256xf32, #tpu.memory_space<vmem>>, vector<1x256xf32>
    %cst = arith.constant 5.000000e-01 : f32
    %1 = vector.broadcast %cst : f32 to vector<1x256xf32>
    %2 = arith.cmpf ogt, %0, %1 : vector<1x256xf32>
    %c0_1 = arith.constant 0 : index
    %c0_2 = arith.constant 0 : index
    %3 = vector.load %arg1[%c0_1, %c0_2] : memref<8x256xf32, #tpu.memory_space<vmem>>, vector<8x256xf32>
    %cst_3 = arith.constant 0.000000e+00 : f32
    %4 = vector.shape_cast %2 : vector<1x256xi1> to vector<1x256xi1>
    %5 = vector.broadcast %4 : vector<1x256xi1> to vector<8x256xi1>
    %6 = vector.broadcast %cst_3 : f32 to vector<8x256xf32>
    %7 = arith.select %5, %6, %3 : vector<8x256xi1>, vector<8x256xf32>
    %8 = arith.truncf %7 : vector<8x256xf32> to vector<8x256xbf16>
    %c0_4 = arith.constant 0 : index
    %c0_5 = arith.constant 0 : index
    %9 = vector.load %arg3[%c0_4, %c0_5] : memref<256x128xbf16, #tpu.memory_space<vmem>>, vector<256x128xbf16>
    %cst_6 = arith.constant dense<0.000000e+00> : vector<8x128xf32>
    %10 = tpu.matmul %8, %9, %cst_6 {dimension_numbers = #tpu.dot_dimension_numbers<[1], [0], [0], [1], [0, 0, 1, 1], [], []>} : vector<8x256xbf16>, vector<256x128xbf16>, vector<8x128xf32> -> vector<8x128xf32>
    %c0_7 = arith.constant 0 : index
    %c0_8 = arith.constant 0 : index
    %11 = vector.load %arg4[%c0_7, %c0_8] : memref<1x128xf32, #tpu.memory_space<vmem>>, vector<1x128xf32>
    %12 = vector.broadcast %11 : vector<1x128xf32> to vector<8x128xf32>
    %13 = arith.addf %10, %12 : vector<8x128xf32>
    %cst_9 = arith.constant 0.000000e+00 : f32
    %14 = vector.broadcast %cst_9 : f32 to vector<8x128xf32>
    %15 = arith.maximumf %13, %14 : vector<8x128xf32>
    %16 = arith.truncf %15 : vector<8x128xf32> to vector<8x128xbf16>
    %c0_10 = arith.constant 0 : index
    %c0_11 = arith.constant 0 : index
    %17 = vector.load %arg5[%c0_10, %c0_11] : memref<128x128xbf16, #tpu.memory_space<vmem>>, vector<128x128xbf16>
    %cst_12 = arith.constant dense<0.000000e+00> : vector<8x128xf32>
    %18 = tpu.matmul %16, %17, %cst_12 {dimension_numbers = #tpu.dot_dimension_numbers<[1], [0], [0], [1], [0, 0, 1, 1], [], []>} : vector<8x128xbf16>, vector<128x128xbf16>, vector<8x128xf32> -> vector<8x128xf32>
    %c0_13 = arith.constant 0 : index
    %c0_14 = arith.constant 0 : index
    %19 = vector.load %arg6[%c0_13, %c0_14] : memref<1x128xf32, #tpu.memory_space<vmem>>, vector<1x128xf32>
    %20 = vector.broadcast %19 : vector<1x128xf32> to vector<8x128xf32>
    %21 = arith.addf %18, %20 : vector<8x128xf32>
    %cst_15 = arith.constant 0.000000e+00 : f32
    %22 = vector.broadcast %cst_15 : f32 to vector<8x128xf32>
    %23 = arith.maximumf %21, %22 : vector<8x128xf32>
    %24 = arith.truncf %23 : vector<8x128xf32> to vector<8x128xbf16>
    %c0_16 = arith.constant 0 : index
    %c0_17 = arith.constant 0 : index
    %25 = vector.load %arg7[%c0_16, %c0_17] : memref<128x128xbf16, #tpu.memory_space<vmem>>, vector<128x128xbf16>
    %cst_18 = arith.constant dense<0.000000e+00> : vector<8x128xf32>
    %26 = tpu.matmul %24, %25, %cst_18 {dimension_numbers = #tpu.dot_dimension_numbers<[1], [0], [0], [1], [0, 0, 1, 1], [], []>} : vector<8x128xbf16>, vector<128x128xbf16>, vector<8x128xf32> -> vector<8x128xf32>
    %c0_19 = arith.constant 0 : index
    %c0_20 = arith.constant 0 : index
    %27 = vector.load %arg8[%c0_19, %c0_20] : memref<1x128xf32, #tpu.memory_space<vmem>>, vector<1x128xf32>
    %28 = vector.broadcast %27 : vector<1x128xf32> to vector<8x128xf32>
    %29 = arith.addf %26, %28 : vector<8x128xf32>
    %cst_21 = arith.constant 0.000000e+00 : f32
    %30 = vector.broadcast %cst_21 : f32 to vector<8x128xf32>
    %31 = arith.maximumf %29, %30 : vector<8x128xf32>
    %32 = arith.truncf %31 : vector<8x128xf32> to vector<8x128xbf16>
    %c0_22 = arith.constant 0 : index
    %c0_23 = arith.constant 0 : index
    %33 = vector.load %arg9[%c0_22, %c0_23] : memref<128x256xbf16, #tpu.memory_space<vmem>>, vector<128x256xbf16>
    %cst_24 = arith.constant dense<0.000000e+00> : vector<8x256xf32>
    %34 = tpu.matmul %32, %33, %cst_24 {dimension_numbers = #tpu.dot_dimension_numbers<[1], [0], [0], [1], [0, 0, 1, 1], [], []>} : vector<8x128xbf16>, vector<128x256xbf16>, vector<8x256xf32> -> vector<8x256xf32>
    %c0_25 = arith.constant 0 : index
    %c0_26 = arith.constant 0 : index
    %35 = vector.load %arg10[%c0_25, %c0_26] : memref<1x256xf32, #tpu.memory_space<vmem>>, vector<1x256xf32>
    %36 = vector.broadcast %35 : vector<1x256xf32> to vector<8x256xf32>
    %37 = arith.addf %34, %36 : vector<8x256xf32>
    %c0_27 = arith.constant 0 : index
    %c0_28 = arith.constant 0 : index
    %38 = vector.load %arg1[%c0_27, %c0_28] : memref<8x256xf32, #tpu.memory_space<vmem>>, vector<8x256xf32>
    %39 = vector.shape_cast %2 : vector<1x256xi1> to vector<1x256xi1>
    %40 = vector.broadcast %39 : vector<1x256xi1> to vector<8x256xi1>
    %41 = arith.select %40, %38, %37 : vector<8x256xi1>, vector<8x256xf32>
    %c0_29 = arith.constant 0 : index
    %c0_30 = arith.constant 0 : index
    %42 = vector.load %arg11[%c0_29, %c0_30] : memref<8x256xf32, #tpu.memory_space<vmem>>, vector<8x256xf32>
    tpu.vector_store %arg11[%c0_29, %c0_30], %41 {strides = array<i32>} : memref<8x256xf32, #tpu.memory_space<vmem>>, vector<8x256xf32>,
    return
  }
  func.func @transform_0(%arg0: i32) -> (i32, i32) {
    %c0_i32 = arith.constant 0 : i32
    %c0_i32_0 = arith.constant 0 : i32
    return %arg0, %c0_i32 : i32, i32
  }
  func.func @transform_1(%arg0: i32) -> (i32, i32) {
    %c0_i32 = arith.constant 0 : i32
    %c0_i32_0 = arith.constant 0 : i32
    %c0_i32_1 = arith.constant 0 : i32
    return %c0_i32, %c0_i32_0 : i32, i32
  }
  func.func @transform_2(%arg0: i32) -> (i32, i32) {
    %c0_i32 = arith.constant 0 : i32
    %c0_i32_0 = arith.constant 0 : i32
    %c0_i32_1 = arith.constant 0 : i32
    return %c0_i32, %c0_i32_0 : i32, i32
  }
  func.func @transform_3(%arg0: i32) -> (i32, i32) {
    %c0_i32 = arith.constant 0 : i32
    %c0_i32_0 = arith.constant 0 : i32
    %c0_i32_1 = arith.constant 0 : i32
    return %c0_i32, %c0_i32_0 : i32, i32
  }
  func.func @transform_4(%arg0: i32) -> (i32, i32) {
    %c0_i32 = arith.constant 0 : i32
    %c0_i32_0 = arith.constant 0 : i32
    %c0_i32_1 = arith.constant 0 : i32
    return %c0_i32, %c0_i32_0 : i32, i32
  }
  func.func @transform_5(%arg0: i32) -> (i32, i32) {
    %c0_i32 = arith.constant 0 : i32
    %c0_i32_0 = arith.constant 0 : i32
    %c0_i32_1 = arith.constant 0 : i32
    return %c0_i32, %c0_i32_0 : i32, i32
  }
  func.func @transform_6(%arg0: i32) -> (i32, i32) {
    %c0_i32 = arith.constant 0 : i32
    %c0_i32_0 = arith.constant 0 : i32
    %c0_i32_1 = arith.constant 0 : i32
    return %c0_i32, %c0_i32_0 : i32, i32
  }
  func.func @transform_7(%arg0: i32) -> (i32, i32) {
    %c0_i32 = arith.constant 0 : i32
    %c0_i32_0 = arith.constant 0 : i32
    %c0_i32_1 = arith.constant 0 : i32
    return %c0_i32, %c0_i32_0 : i32, i32
  }
  func.func @transform_8(%arg0: i32) -> (i32, i32) {
    %c0_i32 = arith.constant 0 : i32
    %c0_i32_0 = arith.constant 0 : i32
    %c0_i32_1 = arith.constant 0 : i32
    return %c0_i32, %c0_i32_0 : i32, i32
  }
  func.func @transform_9(%arg0: i32) -> (i32, i32) {
    %c0_i32 = arith.constant 0 : i32
    %c0_i32_0 = arith.constant 0 : i32
    %c0_i32_1 = arith.constant 0 : i32
    return %c0_i32, %c0_i32_0 : i32, i32
  }
  func.func @transform_10(%arg0: i32) -> (i32, i32) {
    %c0_i32 = arith.constant 0 : i32
    %c0_i32_0 = arith.constant 0 : i32
    return %arg0, %c0_i32 : i32, i32
  }
}

module attributes {stable_mosaic.version = 11 : i64} {
  func.func @_decoder_kernel(%arg0: i32, %arg1: memref<8x256xf32, #tpu.memory_space<vmem>>, %arg2: memref<1x256xf32, #tpu.memory_space<vmem>>, %arg3: memref<256x128xbf16, #tpu.memory_space<vmem>>, %arg4: memref<1x128xf32, #tpu.memory_space<vmem>>, %arg5: memref<128x128xbf16, #tpu.memory_space<vmem>>, %arg6: memref<1x128xf32, #tpu.memory_space<vmem>>, %arg7: memref<128x128xbf16, #tpu.memory_space<vmem>>, %arg8: memref<1x128xf32, #tpu.memory_space<vmem>>, %arg9: memref<128x256xbf16, #tpu.memory_space<vmem>>, %arg10: memref<1x256xf32, #tpu.memory_space<vmem>>, %arg11: memref<8x256xf32, #tpu.memory_space<vmem>>) attributes {dimension_semantics = [#tpu.dimension_semantics<parallel>], iteration_bounds = array<i64: 1>, scalar_prefetch = 0 : i64, scratch_operands = 0 : i64, tpu.core_type = #tpu.core_type<tc>, window_params = [{transform_indices = @transform_0, window_bounds = array<i64: 8, 256>}, {pipeline_mode = #tpu.pipeline_mode<synchronous>, transform_indices = @transform_1, window_bounds = array<i64: 1, 256>}, {pipeline_mode = #tpu.pipeline_mode<synchronous>, transform_indices = @transform_2, window_bounds = array<i64: 256, 128>}, {pipeline_mode = #tpu.pipeline_mode<synchronous>, transform_indices = @transform_3, window_bounds = array<i64: 1, 128>}, {pipeline_mode = #tpu.pipeline_mode<synchronous>, transform_indices = @transform_4, window_bounds = array<i64: 128, 128>}, {pipeline_mode = #tpu.pipeline_mode<synchronous>, transform_indices = @transform_5, window_bounds = array<i64: 1, 128>}, {pipeline_mode = #tpu.pipeline_mode<synchronous>, transform_indices = @transform_6, window_bounds = array<i64: 128, 128>}, {pipeline_mode = #tpu.pipeline_mode<synchronous>, transform_indices = @transform_7, window_bounds = array<i64: 1, 128>}, {pipeline_mode = #tpu.pipeline_mode<synchronous>, transform_indices = @transform_8, window_bounds = array<i64: 128, 256>}, {pipeline_mode = #tpu.pipeline_mode<synchronous>, transform_indices = @transform_9, window_bounds = array<i64: 1, 256>}, {transform_indices = @transform_10, window_bounds = array<i64: 8, 256>}]} {
    %c0 = arith.constant 0 : index
    %c0_0 = arith.constant 0 : index
    %0 = vector.load %arg2[%c0, %c0_0] : memref<1x256xf32, #tpu.memory_space<vmem>>, vector<1x256xf32>
    %cst = arith.constant 5.000000e-01 : f32
    %1 = vector.broadcast %cst : f32 to vector<1x256xf32>
    %2 = arith.cmpf ogt, %0, %1 : vector<1x256xf32>
    %c0_1 = arith.constant 0 : index
    %c0_2 = arith.constant 0 : index
    %3 = vector.load %arg1[%c0_1, %c0_2] : memref<8x256xf32, #tpu.memory_space<vmem>>, vector<8x256xf32>
    %cst_3 = arith.constant 0.000000e+00 : f32
    %4 = vector.shape_cast %2 : vector<1x256xi1> to vector<1x256xi1>
    %5 = vector.broadcast %4 : vector<1x256xi1> to vector<8x256xi1>
    %6 = vector.broadcast %cst_3 : f32 to vector<8x256xf32>
    %7 = arith.select %5, %6, %3 : vector<8x256xi1>, vector<8x256xf32>
    %8 = arith.truncf %7 : vector<8x256xf32> to vector<8x256xbf16>
    %c0_4 = arith.constant 0 : index
    %c0_5 = arith.constant 0 : index
    %9 = vector.load %arg3[%c0_4, %c0_5] : memref<256x128xbf16, #tpu.memory_space<vmem>>, vector<256x128xbf16>
    %cst_6 = arith.constant dense<0.000000e+00> : vector<8x128xf32>
    %10 = tpu.matmul %8, %9, %cst_6 {dimension_numbers = #tpu.dot_dimension_numbers<[1], [0], [0], [1], [0, 0, 1, 1], [], []>} : vector<8x256xbf16>, vector<256x128xbf16>, vector<8x128xf32> -> vector<8x128xf32>
    %c0_7 = arith.constant 0 : index
    %c0_8 = arith.constant 0 : index
    %11 = vector.load %arg4[%c0_7, %c0_8] : memref<1x128xf32, #tpu.memory_space<vmem>>, vector<1x128xf32>
    %12 = vector.broadcast %11 : vector<1x128xf32> to vector<8x128xf32>
    %13 = arith.addf %10, %12 : vector<8x128xf32>
    %cst_9 = arith.constant 0.000000e+00 : f32
    %14 = vector.broadcast %cst_9 : f32 to vector<8x128xf32>
    %15 = arith.maximumf %13, %14 : vector<8x128xf32>
    %16 = arith.truncf %15 : vector<8x128xf32> to vector<8x128xbf16>
    %c0_10 = arith.constant 0 : index
    %c0_11 = arith.constant 0 : index
    %17 = vector.load %arg5[%c0_10, %c0_11] : memref<128x128xbf16, #tpu.memory_space<vmem>>, vector<128x128xbf16>
    %cst_12 = arith.constant dense<0.000000e+00> : vector<8x128xf32>
    %18 = tpu.matmul %16, %17, %cst_12 {dimension_numbers = #tpu.dot_dimension_numbers<[1], [0], [0], [1], [0, 0, 1, 1], [], []>} : vector<8x128xbf16>, vector<128x128xbf16>, vector<8x128xf32> -> vector<8x128xf32>
    %c0_13 = arith.constant 0 : index
    %c0_14 = arith.constant 0 : index
    %19 = vector.load %arg6[%c0_13, %c0_14] : memref<1x128xf32, #tpu.memory_space<vmem>>, vector<1x128xf32>
    %20 = vector.broadcast %19 : vector<1x128xf32> to vector<8x128xf32>
    %21 = arith.addf %18, %20 : vector<8x128xf32>
    %cst_15 = arith.constant 0.000000e+00 : f32
    %22 = vector.broadcast %cst_15 : f32 to vector<8x128xf32>
    %23 = arith.maximumf %21, %22 : vector<8x128xf32>
    %24 = arith.truncf %23 : vector<8x128xf32> to vector<8x128xbf16>
    %c0_16 = arith.constant 0 : index
    %c0_17 = arith.constant 0 : index
    %25 = vector.load %arg7[%c0_16, %c0_17] : memref<128x128xbf16, #tpu.memory_space<vmem>>, vector<128x128xbf16>
    %cst_18 = arith.constant dense<0.000000e+00> : vector<8x128xf32>
    %26 = tpu.matmul %24, %25, %cst_18 {dimension_numbers = #tpu.dot_dimension_numbers<[1], [0], [0], [1], [0, 0, 1, 1], [], []>} : vector<8x128xbf16>, vector<128x128xbf16>, vector<8x128xf32> -> vector<8x128xf32>
    %c0_19 = arith.constant 0 : index
    %c0_20 = arith.constant 0 : index
    %27 = vector.load %arg8[%c0_19, %c0_20] : memref<1x128xf32, #tpu.memory_space<vmem>>, vector<1x128xf32>
    %28 = vector.broadcast %27 : vector<1x128xf32> to vector<8x128xf32>
    %29 = arith.addf %26, %28 : vector<8x128xf32>
    %cst_21 = arith.constant 0.000000e+00 : f32
    %30 = vector.broadcast %cst_21 : f32 to vector<8x128xf32>
    %31 = arith.maximumf %29, %30 : vector<8x128xf32>
    %32 = arith.truncf %31 : vector<8x128xf32> to vector<8x128xbf16>
    %c0_22 = arith.constant 0 : index
    %c0_23 = arith.constant 0 : index
    %33 = vector.load %arg9[%c0_22, %c0_23] : memref<128x256xbf16, #tpu.memory_space<vmem>>, vector<128x256xbf16>
    %cst_24 = arith.constant dense<0.000000e+00> : vector<8x256xf32>
    %34 = tpu.matmul %32, %33, %cst_24 {dimension_numbers = #tpu.dot_dimension_numbers<[1], [0], [0], [1], [0, 0, 1, 1], [], []>} : vector<8x128xbf16>, vector<128x256xbf16>, vector<8x256xf32> -> vector<8x256xf32>
    %c0_25 = arith.constant 0 : index
    %c0_26 = arith.constant 0 : index
    %35 = vector.load %arg10[%c0_25, %c0_26] : memref<1x256xf32, #tpu.memory_space<vmem>>, vector<1x256xf32>
    %36 = vector.broadcast %35 : vector<1x256xf32> to vector<8x256xf32>
    %37 = arith.addf %34, %36 : vector<8x256xf32>
    %c0_27 = arith.constant 0 : index
    %c0_28 = arith.constant 0 : index
    %38 = vector.load %arg1[%c0_27, %c0_28] : memref<8x256xf32, #tpu.memory_space<vmem>>, vector<8x256xf32>
    %39 = vector.shape_cast %2 : vector<1x256xi1> to vector<1x256xi1>
    %40 = vector.broadcast %39 : vector<1x256xi1> to vector<8x256xi1>
    %41 = arith.select %40, %38, %37 : vector<8x256xi1>, vector<8x256xf32>
    %c0_29 = arith.constant 0 : index
    %c0_30 = arith.constant 0 : index
    %42 = vector.load %arg11[%c0_29, %c0_30] : memref<8x256xf32, #tpu.memory_space<vmem>>, vector<8x256xf32>
    tpu.vector_store %arg11[%c0_29, %c0_30], %41 {strides = array<i32>} : memref<8x256xf32, #tpu.memory_space<vmem>>, vector<8x256xf32>,
    return
  }
  func.func @transform_0(%arg0: i32) -> (i32, i32) {
    %c0_i32 = arith.constant 0 : i32
    %c0_i32_0 = arith.constant 0 : i32
    return %arg0, %c0_i32 : i32, i32
  }
  func.func @transform_1(%arg0: i32) -> (i32, i32) {
    %c0_i32 = arith.constant 0 : i32
    %c0_i32_0 = arith.constant 0 : i32
    %c0_i32_1 = arith.constant 0 : i32
    return %c0_i32, %c0_i32_0 : i32, i32
  }
  func.func @transform_2(%arg0: i32) -> (i32, i32) {
    %c0_i32 = arith.constant 0 : i32
    %c0_i32_0 = arith.constant 0 : i32
    %c0_i32_1 = arith.constant 0 : i32
    return %c0_i32, %c0_i32_0 : i32, i32
  }
  func.func @transform_3(%arg0: i32) -> (i32, i32) {
    %c0_i32 = arith.constant 0 : i32
    %c0_i32_0 = arith.constant 0 : i32
    %c0_i32_1 = arith.constant 0 : i32
    return %c0_i32, %c0_i32_0 : i32, i32
  }
  func.func @transform_4(%arg0: i32) -> (i32, i32) {
    %c0_i32 = arith.constant 0 : i32
    %c0_i32_0 = arith.constant 0 : i32
    %c0_i32_1 = arith.constant 0 : i32
    return %c0_i32, %c0_i32_0 : i32, i32
  }
  func.func @transform_5(%arg0: i32) -> (i32, i32) {
    %c0_i32 = arith.constant 0 : i32
    %c0_i32_0 = arith.constant 0 : i32
    %c0_i32_1 = arith.constant 0 : i32
    return %c0_i32, %c0_i32_0 : i32, i32
  }
  func.func @transform_6(%arg0: i32) -> (i32, i32) {
    %c0_i32 = arith.constant 0 : i32
    %c0_i32_0 = arith.constant 0 : i32
    %c0_i32_1 = arith.constant 0 : i32
    return %c0_i32, %c0_i32_0 : i32, i32
  }
  func.func @transform_7(%arg0: i32) -> (i32, i32) {
    %c0_i32 = arith.constant 0 : i32
    %c0_i32_0 = arith.constant 0 : i32
    %c0_i32_1 = arith.constant 0 : i32
    return %c0_i32, %c0_i32_0 : i32, i32
  }
  func.func @transform_8(%arg0: i32) -> (i32, i32) {
    %c0_i32 = arith.constant 0 : i32
    %c0_i32_0 = arith.constant 0 : i32
    %c0_i32_1 = arith.constant 0 : i32
    return %c0_i32, %c0_i32_0 : i32, i32
  }
  func.func @transform_9(%arg0: i32) -> (i32, i32) {
    %c0_i32 = arith.constant 0 : i32
    %c0_i32_0 = arith.constant 0 : i32
    %c0_i32_1 = arith.constant 0 : i32
    return %c0_i32, %c0_i32_0 : i32, i32
  }
  func.func @transform_10(%arg0: i32) -> (i32, i32) {
    %c0_i32 = arith.constant 0 : i32
    %c0_i32_0 = arith.constant 0 : i32
    return %arg0, %c0_i32 : i32, i32
  }
}

</mosaic_0001>

<llo_original>
// kernel: tpu_custom_call.1
$region0: #{tpu_custom_call.1}
  #allocation0 [shape = 'u32[]', space=smem, size = 0x4, offset = 0x4, fixed_abs, tag = 'smem constant byte address 0x4 - core index']
  #allocation1 [shape = 'u32[144,128]{1,0:T(1,128)}', space=vmem, size = 0x12000, scoped, tag = 'internal scratch']
  %s0 = inlined_call_operand.hbm [shape: f32[8,256], index: 0, kind: input, shape index: {}, may-alias: {0,10}]
  %s1 = inlined_call_operand.vmem [shape: f32[1,256], index: 1, kind: input, shape index: {}]
  %s2 = inlined_call_operand.hbm [shape: bf16[256,128], index: 2, kind: input, shape index: {}]
  %s3 = inlined_call_operand.vmem [shape: f32[1,128], index: 3, kind: input, shape index: {}]
  %s4 = inlined_call_operand.hbm [shape: bf16[128,128], index: 4, kind: input, shape index: {}]
  %s5 = inlined_call_operand.vmem [shape: f32[1,128], index: 5, kind: input, shape index: {}]
  %s6 = inlined_call_operand.hbm [shape: bf16[128,128], index: 6, kind: input, shape index: {}]
  %s7 = inlined_call_operand.vmem [shape: f32[1,128], index: 7, kind: input, shape index: {}]
  %s8 = inlined_call_operand.hbm [shape: bf16[128,256], index: 8, kind: input, shape index: {}]
  %s9 = inlined_call_operand.vmem [shape: f32[1,256], index: 9, kind: input, shape index: {}]
  %s10 = inlined_call_operand.hbm [shape: f32[8,256], index: 10, kind: output, shape index: {}, may-alias: {0,10}]
  %s11 = sld [smem:[#allocation0]]
  $region70: #{tpu_custom_call.1} parent=0
    _
  %s13 = ssub.s32 1, %s11
  %s14 = scalar_select 0, %s13, %s11
  $region1: #{tpu_custom_call.1} parent=0
    #allocation2 [shape = 'u8[8192]{0}', space=vmem, size = 0x2000, scoped, tag = 'input window, operand 0, single buffered']
    #allocation3 [shape = 's32[1]{0}', space=sflag, size = 0x4, scoped, tag = 'scoped memory for tpu_custom_call.1']
    #allocation4 [shape = 's32[1]{0}', space=sflag, size = 0x4, scoped, tag = 'scoped memory for tpu_custom_call.1']
    #allocation5 [shape = 'u8[65536]{0}', space=vmem, size = 0x10000, scoped, tag = 'input window, operand 2, single buffered']
    #allocation6 [shape = 's32[1]{0}', space=sflag, size = 0x4, scoped, tag = 'scoped memory for tpu_custom_call.1']
    #allocation7 [shape = 'u8[32768]{0}', space=vmem, size = 0x8000, scoped, tag = 'input window, operand 4, single buffered']
    #allocation8 [shape = 'u8[32768]{0}', space=vmem, size = 0x8000, scoped, tag = 'input window, operand 6, single buffered']
    #allocation9 [shape = 's32[1]{0}', space=sflag, size = 0x4, scoped, tag = 'scoped memory for tpu_custom_call.1']
    #allocation10 [shape = 'u8[65536]{0}', space=vmem, size = 0x10000, scoped, tag = 'input window, operand 8, single buffered']
    #allocation11 [shape = 'u8[8192]{0}', space=vmem, size = 0x2000, scoped, tag = 'output window, operand 0, single buffered']
    %15 = vsyncpa [#allocation3], 0
    %16 = vsyncpa [#allocation6], 0
    %17 = vsyncpa [#allocation9], 0
    %18 = vsyncpa [#allocation4], 0
    // Predicated region
    $region2: #{tpu_custom_call.1} parent=1 // pred_check
      _
    $region3: #{tpu_custom_call.1} parent=1 // pred_check_branch
      %20 = sbr.rel (0) target = $region5
    $region4: #{tpu_custom_call.1} parent=1 // pred_region
      %s22 = ssub.s32 256, 256
      %23 = vsyncadd [#allocation3], %s22
      %s25 = sshll.u32 [#allocation2], 4
      %s26 = int_to_ptr.vmem [resolvable:$true] %s25
      %28 = dma.hbm_to_vmem [thread:$0]  %s0, 256, %s26, [#allocation3]
    $region5: #{tpu_custom_call.1} parent=1 // pred_fallthru
      _
    // Predicated region
    $region6: #{tpu_custom_call.1} parent=1 // pred_check
      _
    $region7: #{tpu_custom_call.1} parent=1 // pred_check_branch
      %30 = sbr.rel (0) target = $region9
    $region8: #{tpu_custom_call.1} parent=1 // pred_region
      _
    $region9: #{tpu_custom_call.1} parent=1 // pred_fallthru
      _
    // Predicated region
    $region10: #{tpu_custom_call.1} parent=1 // pred_check
      _
    $region11: #{tpu_custom_call.1} parent=1 // pred_check_branch
      %32 = sbr.rel (0) target = $region13
    $region12: #{tpu_custom_call.1} parent=1 // pred_region
      %s34 = ssub.s32 2048, 2048
      %35 = vsyncadd [#allocation6], %s34
      %s36 = sshll.u32 [#allocation5], 4
      %s37 = int_to_ptr.vmem [resolvable:$true] %s36
      %42 = dma.hbm_to_vmem [thread:$0]  %s2, 2048, %s37, [#allocation6], 64, 64, 4
    $region13: #{tpu_custom_call.1} parent=1 // pred_fallthru
      _
    // Predicated region
    $region14: #{tpu_custom_call.1} parent=1 // pred_check
      _
    $region15: #{tpu_custom_call.1} parent=1 // pred_check_branch
      %44 = sbr.rel (0) target = $region17
    $region16: #{tpu_custom_call.1} parent=1 // pred_region
      _
    $region17: #{tpu_custom_call.1} parent=1 // pred_fallthru
      _
    // Predicated region
    $region18: #{tpu_custom_call.1} parent=1 // pred_check
      _
    $region19: #{tpu_custom_call.1} parent=1 // pred_check_branch
      %46 = sbr.rel (0) target = $region21
    $region20: #{tpu_custom_call.1} parent=1 // pred_region
      %s48 = ssub.s32 1024, 1024
      %49 = vsyncadd [#allocation6], %s48
      %s50 = sshll.u32 [#allocation7], 4
      %s51 = int_to_ptr.vmem [resolvable:$true] %s50
      %56 = dma.hbm_to_vmem [thread:$0]  %s4, 1024, %s51, [#allocation6], 64, 64, 4
    $region21: #{tpu_custom_call.1} parent=1 // pred_fallthru
      _
    // Predicated region
    $region22: #{tpu_custom_call.1} parent=1 // pred_check
      _
    $region23: #{tpu_custom_call.1} parent=1 // pred_check_branch
      %58 = sbr.rel (0) target = $region25
    $region24: #{tpu_custom_call.1} parent=1 // pred_region
      _
    $region25: #{tpu_custom_call.1} parent=1 // pred_fallthru
      _
    // Predicated region
    $region26: #{tpu_custom_call.1} parent=1 // pred_check
      _
    $region27: #{tpu_custom_call.1} parent=1 // pred_check_branch
      %60 = sbr.rel (0) target = $region29
    $region28: #{tpu_custom_call.1} parent=1 // pred_region
      %s62 = ssub.s32 1024, 1024
      %63 = vsyncadd [#allocation9], %s62
      %s64 = sshll.u32 [#allocation8], 4
      %s65 = int_to_ptr.vmem [resolvable:$true] %s64
      %70 = dma.hbm_to_vmem [thread:$0]  %s6, 1024, %s65, [#allocation9], 64, 64, 4
    $region29: #{tpu_custom_call.1} parent=1 // pred_fallthru
      _
    // Predicated region
    $region30: #{tpu_custom_call.1} parent=1 // pred_check
      _
    $region31: #{tpu_custom_call.1} parent=1 // pred_check_branch
      %72 = sbr.rel (0) target = $region33
    $region32: #{tpu_custom_call.1} parent=1 // pred_region
      _
    $region33: #{tpu_custom_call.1} parent=1 // pred_fallthru
      _
    // Predicated region
    $region34: #{tpu_custom_call.1} parent=1 // pred_check
      _
    $region35: #{tpu_custom_call.1} parent=1 // pred_check_branch
      %74 = sbr.rel (0) target = $region37
    $region36: #{tpu_custom_call.1} parent=1 // pred_region
      %s76 = ssub.s32 2048, 2048
      %77 = vsyncadd [#allocation9], %s76
      %s78 = sshll.u32 [#allocation10], 4
      %s79 = int_to_ptr.vmem [resolvable:$true] %s78
      %84 = dma.hbm_to_vmem [thread:$0]  %s8, 2048, %s79, [#allocation9], 128, 128, 8
    $region37: #{tpu_custom_call.1} parent=1 // pred_fallthru
      _
    // Predicated region
    $region38: #{tpu_custom_call.1} parent=1 // pred_check
      _
    $region39: #{tpu_custom_call.1} parent=1 // pred_check_branch
      %86 = sbr.rel (0) target = $region41
    $region40: #{tpu_custom_call.1} parent=1 // pred_region
      _
    $region41: #{tpu_custom_call.1} parent=1 // pred_fallthru
      _
    // Predicated region
    $region42: #{tpu_custom_call.1} parent=1 // pred_check
      _
    $region43: #{tpu_custom_call.1} parent=1 // pred_check_branch
      %88 = sbr.rel (0) target = $region45
    $region44: #{tpu_custom_call.1} parent=1 // pred_region
      %89 = dma.done [#allocation3], 256
    $region45: #{tpu_custom_call.1} parent=1 // pred_fallthru
      _
    // Predicated region
    $region46: #{tpu_custom_call.1} parent=1 // pred_check
      _
    $region47: #{tpu_custom_call.1} parent=1 // pred_check_branch
      %91 = sbr.rel (0) target = $region49
    $region48: #{tpu_custom_call.1} parent=1 // pred_region
      %92 = dma.done [#allocation6], 2048
    $region49: #{tpu_custom_call.1} parent=1 // pred_fallthru
      _
    // Predicated region
    $region50: #{tpu_custom_call.1} parent=1 // pred_check
      _
    $region51: #{tpu_custom_call.1} parent=1 // pred_check_branch
      %94 = sbr.rel (0) target = $region53
    $region52: #{tpu_custom_call.1} parent=1 // pred_region
      %95 = dma.done [#allocation6], 1024
    $region53: #{tpu_custom_call.1} parent=1 // pred_fallthru
      _
    // Predicated region
    $region54: #{tpu_custom_call.1} parent=1 // pred_check
      _
    $region55: #{tpu_custom_call.1} parent=1 // pred_check_branch
      %97 = sbr.rel (0) target = $region57
    $region56: #{tpu_custom_call.1} parent=1 // pred_region
      %98 = dma.done [#allocation9], 1024
    $region57: #{tpu_custom_call.1} parent=1 // pred_fallthru
      _
    // Predicated region
    $region58: #{tpu_custom_call.1} parent=1 // pred_check
      _
    $region59: #{tpu_custom_call.1} parent=1 // pred_check_branch
      %100 = sbr.rel (0) target = $region61
    $region60: #{tpu_custom_call.1} parent=1 // pred_region
      %101 = dma.done [#allocation9], 2048
    $region61: #{tpu_custom_call.1} parent=1 // pred_fallthru
      _
    %v103 = vld [vmem:[%s1] sm:$0x3]
    %vm104 = vcmp.gt.f32.partialorder %v103, 0.5
    %v105 = vld [vmem:[#allocation2] sm:$0xff]
    %v106 = vld [vmem:[#allocation2 + $0x8] sm:$0xff]
    %v107 = vsel %vm104, 1, 0
    %v108 = vlaneseq
    %v109 = vshrl.u32 %v108, 7
    %v110 = vsub.s32 0, %v109
    %v111 = vrot.slane %v107, %v110
    %v112 = vlaneseq
    %v113 = vshrl.u32 %v112, 7
    %v114 = vsub.s32 1, %v113
    %v115 = vrot.slane %v107, %v114
    %vm116 = vcmp.eq.s32.totalorder %v111, 1
    %vm117 = vcmp.eq.s32.totalorder %v115, 1
    %v118 = vsel %vm116, 0.0, %v105
    %v119 = vsel %vm117, 0.0, %v106
    %v120 = vpack.c.bf16 %v118, %v118
    %v121 = vpack.c.bf16 %v119, %v119
    %v122 = vld [vmem:[#allocation5] sm:$0xf]
    %v123 = vld [vmem:[#allocation5 + $0x4] sm:$0xf]
    %v124 = vld [vmem:[#allocation5 + $0x8] sm:$0xf]
    %v125 = vld [vmem:[#allocation5 + $0xc] sm:$0xf]
    %v126 = vld [vmem:[#allocation5 + $0x10] sm:$0xf]
    %v127 = vld [vmem:[#allocation5 + $0x14] sm:$0xf]
    %v128 = vld [vmem:[#allocation5 + $0x18] sm:$0xf]
    %v129 = vld [vmem:[#allocation5 + $0x1c] sm:$0xf]
    %v130 = vld [vmem:[#allocation5 + $0x20] sm:$0xf]
    %v131 = vld [vmem:[#allocation5 + $0x24] sm:$0xf]
    %v132 = vld [vmem:[#allocation5 + $0x28] sm:$0xf]
    %v133 = vld [vmem:[#allocation5 + $0x2c] sm:$0xf]
    %v134 = vld [vmem:[#allocation5 + $0x30] sm:$0xf]
    %v135 = vld [vmem:[#allocation5 + $0x34] sm:$0xf]
    %v136 = vld [vmem:[#allocation5 + $0x38] sm:$0xf]
    %v137 = vld [vmem:[#allocation5 + $0x3c] sm:$0xf]
    %v138 = vld [vmem:[#allocation5 + $0x40] sm:$0xf]
    %v139 = vld [vmem:[#allocation5 + $0x44] sm:$0xf]
    %v140 = vld [vmem:[#allocation5 + $0x48] sm:$0xf]
    %v141 = vld [vmem:[#allocation5 + $0x4c] sm:$0xf]
    %v142 = vld [vmem:[#allocation5 + $0x50] sm:$0xf]
    %v143 = vld [vmem:[#allocation5 + $0x54] sm:$0xf]
    %v144 = vld [vmem:[#allocation5 + $0x58] sm:$0xf]
    %v145 = vld [vmem:[#allocation5 + $0x5c] sm:$0xf]
    %v146 = vld [vmem:[#allocation5 + $0x60] sm:$0xf]
    %v147 = vld [vmem:[#allocation5 + $0x64] sm:$0xf]
    %v148 = vld [vmem:[#allocation5 + $0x68] sm:$0xf]
    %v149 = vld [vmem:[#allocation5 + $0x6c] sm:$0xf]
    %v150 = vld [vmem:[#allocation5 + $0x70] sm:$0xf]
    %v151 = vld [vmem:[#allocation5 + $0x74] sm:$0xf]
    %v152 = vld [vmem:[#allocation5 + $0x78] sm:$0xf]
    %v153 = vld [vmem:[#allocation5 + $0x7c] sm:$0xf]
    %v154 = vld [vmem:[%s3] sm:$0x1]
    %v156 = vlaneseq
    %v157 = vshrl.u32 %v156, 7
    %v158 = vsub.s32 0, %v157
    %v159 = vrot.slane %v154, %v158
    %v193 = vunpack.c.l.b16 %v122
    %v194 = vunpack.c.l.b16 %v123
    %v195 = vunpack.c.l.b16 %v124
    %v196 = vunpack.c.l.b16 %v125
    %v197 = vunpack.c.l.b16 %v126
    %v198 = vunpack.c.l.b16 %v127
    %v199 = vunpack.c.l.b16 %v128
    %v200 = vunpack.c.l.b16 %v129
    %v201 = vunpack.c.l.b16 %v130
    %v202 = vunpack.c.l.b16 %v131
    %v203 = vunpack.c.l.b16 %v132
    %v204 = vunpack.c.l.b16 %v133
    %v205 = vunpack.c.l.b16 %v134
    %v206 = vunpack.c.l.b16 %v135
    %v207 = vunpack.c.l.b16 %v136
    %v208 = vunpack.c.l.b16 %v137
    %v209 = vunpack.c.l.b16 %v138
    %v210 = vunpack.c.l.b16 %v139
    %v211 = vunpack.c.l.b16 %v140
    %v212 = vunpack.c.l.b16 %v141
    %v213 = vunpack.c.l.b16 %v142
    %v214 = vunpack.c.l.b16 %v143
    %v215 = vunpack.c.l.b16 %v144
    %v216 = vunpack.c.l.b16 %v145
    %v217 = vunpack.c.l.b16 %v146
    %v218 = vunpack.c.l.b16 %v147
    %v219 = vunpack.c.l.b16 %v148
    %v220 = vunpack.c.l.b16 %v149
    %v221 = vunpack.c.l.b16 %v150
    %v222 = vunpack.c.l.b16 %v151
    %v223 = vunpack.c.l.b16 %v152
    %v224 = vunpack.c.l.b16 %v153
    %v225 = vpack.c.b16 %v194, %v193
    %v226 = vpack.c.b16 %v196, %v195
    %v227 = vpack.c.b16 %v198, %v197
    %v228 = vpack.c.b16 %v200, %v199
    %v229 = vpack.c.b16 %v202, %v201
    %v230 = vpack.c.b16 %v204, %v203
    %v231 = vpack.c.b16 %v206, %v205
    %v232 = vpack.c.b16 %v208, %v207
    %v233 = vpack.c.b16 %v210, %v209
    %v234 = vpack.c.b16 %v212, %v211
    %v235 = vpack.c.b16 %v214, %v213
    %v236 = vpack.c.b16 %v216, %v215
    %v237 = vpack.c.b16 %v218, %v217
    %v238 = vpack.c.b16 %v220, %v219
    %v239 = vpack.c.b16 %v222, %v221
    %v240 = vpack.c.b16 %v224, %v223
    %257 = vmatprep.subr.bf16.mxu0 0
    %258 = vmatpush1.bf16.msra.mxu0 %v225
    %259 = vmatprep.subr.bf16.mxu0 0
    %260 = vmatpush1.bf16.msra.mxu0 %v226
    %261 = vmatprep.subr.bf16.mxu0 0
    %262 = vmatpush1.bf16.msra.mxu0 %v227
    %263 = vmatprep.subr.bf16.mxu0 0
    %264 = vmatpush1.bf16.msra.mxu0 %v228
    %265 = vmatprep.subr.bf16.mxu0 0
    %266 = vmatpush1.bf16.msra.mxu0 %v229
    %267 = vmatprep.subr.bf16.mxu0 0
    %268 = vmatpush1.bf16.msra.mxu0 %v230
    %269 = vmatprep.subr.bf16.mxu0 0
    %270 = vmatpush1.bf16.msra.mxu0 %v231
    %271 = vmatprep.subr.bf16.mxu0 0
    %272 = vmatpush1.bf16.msra.mxu0 %v232
    %273 = vmatprep.subr.bf16.mxu0 0
    %274 = vmatpush1.bf16.msra.mxu0 %v233
    %275 = vmatprep.subr.bf16.mxu0 0
    %276 = vmatpush1.bf16.msra.mxu0 %v234
    %277 = vmatprep.subr.bf16.mxu0 0
    %278 = vmatpush1.bf16.msra.mxu0 %v235
    %279 = vmatprep.subr.bf16.mxu0 0
    %280 = vmatpush1.bf16.msra.mxu0 %v236
    %281 = vmatprep.subr.bf16.mxu0 0
    %282 = vmatpush1.bf16.msra.mxu0 %v237
    %283 = vmatprep.subr.bf16.mxu0 0
    %284 = vmatpush1.bf16.msra.mxu0 %v238
    %285 = vmatprep.subr.bf16.mxu0 0
    %286 = vmatpush1.bf16.msra.mxu0 %v239
    %287 = vmatprep.subr.bf16.mxu0 0
    %288 = vmatpush1.bf16.msra.mxu0 %v240
    %289 = vmatprep.mubr.bf16.mxu0 %v121
    %290 = vmatmul.mubr.bf16.gmra.mrb[0].mxu0 %v120
    %v291 = vpop.f32.mrb[0].mxu0
    %v292 = vadd.f32 %v159, %v291
    %v293 = vpop.f32.mrb[0].mxu0
    %v294 = vpop.f32.mrb[0].mxu0
    %v295 = vpop.f32.mrb[0].mxu0
    %296 = vdwg.mxu0
    %v297 = vmax.f32 %v292, 0.0
    %v298 = vpack.c.bf16 %v297, %v297
    %v299 = vld [vmem:[#allocation7] sm:$0xf]
    %v300 = vld [vmem:[#allocation7 + $0x4] sm:$0xf]
    %v301 = vld [vmem:[#allocation7 + $0x8] sm:$0xf]
    %v302 = vld [vmem:[#allocation7 + $0xc] sm:$0xf]
    %v303 = vld [vmem:[#allocation7 + $0x10] sm:$0xf]
    %v304 = vld [vmem:[#allocation7 + $0x14] sm:$0xf]
    %v305 = vld [vmem:[#allocation7 + $0x18] sm:$0xf]
    %v306 = vld [vmem:[#allocation7 + $0x1c] sm:$0xf]
    %v307 = vld [vmem:[#allocation7 + $0x20] sm:$0xf]
    %v308 = vld [vmem:[#allocation7 + $0x24] sm:$0xf]
    %v309 = vld [vmem:[#allocation7 + $0x28] sm:$0xf]
    %v310 = vld [vmem:[#allocation7 + $0x2c] sm:$0xf]
    %v311 = vld [vmem:[#allocation7 + $0x30] sm:$0xf]
    %v312 = vld [vmem:[#allocation7 + $0x34] sm:$0xf]
    %v313 = vld [vmem:[#allocation7 + $0x38] sm:$0xf]
    %v314 = vld [vmem:[#allocation7 + $0x3c] sm:$0xf]
    %v315 = vld [vmem:[%s5] sm:$0x1]
    %v317 = vlaneseq
    %v318 = vshrl.u32 %v317, 7
    %v319 = vsub.s32 0, %v318
    %v320 = vrot.slane %v315, %v319
    %v338 = vunpack.c.l.b16 %v299
    %v339 = vunpack.c.l.b16 %v300
    %v340 = vunpack.c.l.b16 %v301
    %v341 = vunpack.c.l.b16 %v302
    %v342 = vunpack.c.l.b16 %v303
    %v343 = vunpack.c.l.b16 %v304
    %v344 = vunpack.c.l.b16 %v305
    %v345 = vunpack.c.l.b16 %v306
    %v346 = vunpack.c.l.b16 %v307
    %v347 = vunpack.c.l.b16 %v308
    %v348 = vunpack.c.l.b16 %v309
    %v349 = vunpack.c.l.b16 %v310
    %v350 = vunpack.c.l.b16 %v311
    %v351 = vunpack.c.l.b16 %v312
    %v352 = vunpack.c.l.b16 %v313
    %v353 = vunpack.c.l.b16 %v314
    %v354 = vpack.c.b16 %v339, %v338
    %v355 = vpack.c.b16 %v341, %v340
    %v356 = vpack.c.b16 %v343, %v342
    %v357 = vpack.c.b16 %v345, %v344
    %v358 = vpack.c.b16 %v347, %v346
    %v359 = vpack.c.b16 %v349, %v348
    %v360 = vpack.c.b16 %v351, %v350
    %v361 = vpack.c.b16 %v353, %v352
    %370 = vmatprep.subr.bf16.mxu0 0
    %371 = vmatpush1.bf16.msra.mxu0 %v354
    %372 = vmatprep.subr.bf16.mxu0 0
    %373 = vmatpush1.bf16.msra.mxu0 %v355
    %374 = vmatprep.subr.bf16.mxu0 0
    %375 = vmatpush1.bf16.msra.mxu0 %v356
    %376 = vmatprep.subr.bf16.mxu0 0
    %377 = vmatpush1.bf16.msra.mxu0 %v357
    %378 = vmatprep.subr.bf16.mxu0 0
    %379 = vmatpush1.bf16.msra.mxu0 %v358
    %380 = vmatprep.subr.bf16.mxu0 0
    %381 = vmatpush1.bf16.msra.mxu0 %v359
    %382 = vmatprep.subr.bf16.mxu0 0
    %383 = vmatpush1.bf16.msra.mxu0 %v360
    %384 = vmatprep.subr.bf16.mxu0 0
    %385 = vmatpush1.bf16.msra.mxu0 %v361
    %386 = vmatprep.subr.bf16.mxu0 0
    %387 = vmatpush1.bf16.msra.mxu0 0
    %388 = vmatprep.subr.bf16.mxu0 0
    %389 = vmatpush1.bf16.msra.mxu0 0
    %390 = vmatprep.subr.bf16.mxu0 0
    %391 = vmatpush1.bf16.msra.mxu0 0
    %392 = vmatprep.subr.bf16.mxu0 0
    %393 = vmatpush1.bf16.msra.mxu0 0
    %394 = vmatprep.subr.bf16.mxu0 0
    %395 = vmatpush1.bf16.msra.mxu0 0
    %396 = vmatprep.subr.bf16.mxu0 0
    %397 = vmatpush1.bf16.msra.mxu0 0
    %398 = vmatprep.subr.bf16.mxu0 0
    %399 = vmatpush1.bf16.msra.mxu0 0
    %400 = vmatprep.subr.bf16.mxu0 0
    %401 = vmatpush1.bf16.msra.mxu0 0
    %402 = vmatprep.mubr.bf16.mxu0 0
    %403 = vmatmul.mubr.bf16.gmra.mrb[0].mxu0 %v298
    %v404 = vpop.f32.mrb[0].mxu0
    %v405 = vadd.f32 %v320, %v404
    %v406 = vpop.f32.mrb[0].mxu0
    %v407 = vpop.f32.mrb[0].mxu0
    %v408 = vpop.f32.mrb[0].mxu0
    %409 = vdwg.mxu0
    %v410 = vmax.f32 %v405, 0.0
    %v411 = vpack.c.bf16 %v410, %v410
    %v412 = vld [vmem:[#allocation8] sm:$0xf]
    %v413 = vld [vmem:[#allocation8 + $0x4] sm:$0xf]
    %v414 = vld [vmem:[#allocation8 + $0x8] sm:$0xf]
    %v415 = vld [vmem:[#allocation8 + $0xc] sm:$0xf]
    %v416 = vld [vmem:[#allocation8 + $0x10] sm:$0xf]
    %v417 = vld [vmem:[#allocation8 + $0x14] sm:$0xf]
    %v418 = vld [vmem:[#allocation8 + $0x18] sm:$0xf]
    %v419 = vld [vmem:[#allocation8 + $0x1c] sm:$0xf]
    %v420 = vld [vmem:[#allocation8 + $0x20] sm:$0xf]
    %v421 = vld [vmem:[#allocation8 + $0x24] sm:$0xf]
    %v422 = vld [vmem:[#allocation8 + $0x28] sm:$0xf]
    %v423 = vld [vmem:[#allocation8 + $0x2c] sm:$0xf]
    %v424 = vld [vmem:[#allocation8 + $0x30] sm:$0xf]
    %v425 = vld [vmem:[#allocation8 + $0x34] sm:$0xf]
    %v426 = vld [vmem:[#allocation8 + $0x38] sm:$0xf]
    %v427 = vld [vmem:[#allocation8 + $0x3c] sm:$0xf]
    %v428 = vld [vmem:[%s7] sm:$0x1]
    %v430 = vlaneseq
    %v431 = vshrl.u32 %v430, 7
    %v432 = vsub.s32 0, %v431
    %v433 = vrot.slane %v428, %v432
    %v451 = vunpack.c.l.b16 %v412
    %v452 = vunpack.c.l.b16 %v413
    %v453 = vunpack.c.l.b16 %v414
    %v454 = vunpack.c.l.b16 %v415
    %v455 = vunpack.c.l.b16 %v416
    %v456 = vunpack.c.l.b16 %v417
    %v457 = vunpack.c.l.b16 %v418
    %v458 = vunpack.c.l.b16 %v419
    %v459 = vunpack.c.l.b16 %v420
    %v460 = vunpack.c.l.b16 %v421
    %v461 = vunpack.c.l.b16 %v422
    %v462 = vunpack.c.l.b16 %v423
    %v463 = vunpack.c.l.b16 %v424
    %v464 = vunpack.c.l.b16 %v425
    %v465 = vunpack.c.l.b16 %v426
    %v466 = vunpack.c.l.b16 %v427
    %v467 = vpack.c.b16 %v452, %v451
    %v468 = vpack.c.b16 %v454, %v453
    %v469 = vpack.c.b16 %v456, %v455
    %v470 = vpack.c.b16 %v458, %v457
    %v471 = vpack.c.b16 %v460, %v459
    %v472 = vpack.c.b16 %v462, %v461
    %v473 = vpack.c.b16 %v464, %v463
    %v474 = vpack.c.b16 %v466, %v465
    %483 = vmatprep.subr.bf16.mxu0 0
    %484 = vmatpush1.bf16.msra.mxu0 %v467
    %485 = vmatprep.subr.bf16.mxu0 0
    %486 = vmatpush1.bf16.msra.mxu0 %v468
    %487 = vmatprep.subr.bf16.mxu0 0
    %488 = vmatpush1.bf16.msra.mxu0 %v469
    %489 = vmatprep.subr.bf16.mxu0 0
    %490 = vmatpush1.bf16.msra.mxu0 %v470
    %491 = vmatprep.subr.bf16.mxu0 0
    %492 = vmatpush1.bf16.msra.mxu0 %v471
    %493 = vmatprep.subr.bf16.mxu0 0
    %494 = vmatpush1.bf16.msra.mxu0 %v472
    %495 = vmatprep.subr.bf16.mxu0 0
    %496 = vmatpush1.bf16.msra.mxu0 %v473
    %497 = vmatprep.subr.bf16.mxu0 0
    %498 = vmatpush1.bf16.msra.mxu0 %v474
    %499 = vmatprep.subr.bf16.mxu0 0
    %500 = vmatpush1.bf16.msra.mxu0 0
    %501 = vmatprep.subr.bf16.mxu0 0
    %502 = vmatpush1.bf16.msra.mxu0 0
    %503 = vmatprep.subr.bf16.mxu0 0
    %504 = vmatpush1.bf16.msra.mxu0 0
    %505 = vmatprep.subr.bf16.mxu0 0
    %506 = vmatpush1.bf16.msra.mxu0 0
    %507 = vmatprep.subr.bf16.mxu0 0
    %508 = vmatpush1.bf16.msra.mxu0 0
    %509 = vmatprep.subr.bf16.mxu0 0
    %510 = vmatpush1.bf16.msra.mxu0 0
    %511 = vmatprep.subr.bf16.mxu0 0
    %512 = vmatpush1.bf16.msra.mxu0 0
    %513 = vmatprep.subr.bf16.mxu0 0
    %514 = vmatpush1.bf16.msra.mxu0 0
    %515 = vmatprep.mubr.bf16.mxu0 0
    %516 = vmatmul.mubr.bf16.gmra.mrb[0].mxu0 %v411
    %v517 = vpop.f32.mrb[0].mxu0
    %v518 = vadd.f32 %v433, %v517
    %v519 = vpop.f32.mrb[0].mxu0
    %v520 = vpop.f32.mrb[0].mxu0
    %v521 = vpop.f32.mrb[0].mxu0
    %522 = vdwg.mxu0
    %v523 = vmax.f32 %v518, 0.0
    %v524 = vpack.c.bf16 %v523, %v523
    %v525 = vld [vmem:[#allocation10] sm:$0xff]
    %v526 = vld [vmem:[#allocation10 + $0x8] sm:$0xff]
    %v527 = vld [vmem:[#allocation10 + $0x10] sm:$0xff]
    %v528 = vld [vmem:[#allocation10 + $0x18] sm:$0xff]
    %v529 = vld [vmem:[#allocation10 + $0x20] sm:$0xff]
    %v530 = vld [vmem:[#allocation10 + $0x28] sm:$0xff]
    %v531 = vld [vmem:[#allocation10 + $0x30] sm:$0xff]
    %v532 = vld [vmem:[#allocation10 + $0x38] sm:$0xff]
    %v533 = vld [vmem:[#allocation10 + $0x40] sm:$0xff]
    %v534 = vld [vmem:[#allocation10 + $0x48] sm:$0xff]
    %v535 = vld [vmem:[#allocation10 + $0x50] sm:$0xff]
    %v536 = vld [vmem:[#allocation10 + $0x58] sm:$0xff]
    %v537 = vld [vmem:[#allocation10 + $0x60] sm:$0xff]
    %v538 = vld [vmem:[#allocation10 + $0x68] sm:$0xff]
    %v539 = vld [vmem:[#allocation10 + $0x70] sm:$0xff]
    %v540 = vld [vmem:[#allocation10 + $0x78] sm:$0xff]
    %v541 = vld [vmem:[%s9] sm:$0x3]
    %v543 = vlaneseq
    %v544 = vshrl.u32 %v543, 7
    %v545 = vsub.s32 0, %v544
    %v546 = vrot.slane %v541, %v545
    %v547 = vlaneseq
    %v548 = vshrl.u32 %v547, 7
    %v549 = vsub.s32 1, %v548
    %v550 = vrot.slane %v541, %v549
    %v569 = vunpack.c.l.b16 %v525
    %v570 = vunpack.c.h.b16 %v525
    %v571 = vunpack.c.l.b16 %v526
    %v572 = vunpack.c.h.b16 %v526
    %v573 = vunpack.c.l.b16 %v527
    %v574 = vunpack.c.h.b16 %v527
    %v575 = vunpack.c.l.b16 %v528
    %v576 = vunpack.c.h.b16 %v528
    %v577 = vunpack.c.l.b16 %v529
    %v578 = vunpack.c.h.b16 %v529
    %v579 = vunpack.c.l.b16 %v530
    %v580 = vunpack.c.h.b16 %v530
    %v581 = vunpack.c.l.b16 %v531
    %v582 = vunpack.c.h.b16 %v531
    %v583 = vunpack.c.l.b16 %v532
    %v584 = vunpack.c.h.b16 %v532
    %v585 = vunpack.c.l.b16 %v533
    %v586 = vunpack.c.h.b16 %v533
    %v587 = vunpack.c.l.b16 %v534
    %v588 = vunpack.c.h.b16 %v534
    %v589 = vunpack.c.l.b16 %v535
    %v590 = vunpack.c.h.b16 %v535
    %v591 = vunpack.c.l.b16 %v536
    %v592 = vunpack.c.h.b16 %v536
    %v593 = vunpack.c.l.b16 %v537
    %v594 = vunpack.c.h.b16 %v537
    %v595 = vunpack.c.l.b16 %v538
    %v596 = vunpack.c.h.b16 %v538
    %v597 = vunpack.c.l.b16 %v539
    %v598 = vunpack.c.h.b16 %v539
    %v599 = vunpack.c.l.b16 %v540
    %v600 = vunpack.c.h.b16 %v540
    %v601 = vpack.c.b16 %v571, %v569
    %v602 = vpack.c.b16 %v572, %v570
    %v603 = vpack.c.b16 %v575, %v573
    %v604 = vpack.c.b16 %v576, %v574
    %v605 = vpack.c.b16 %v579, %v577
    %v606 = vpack.c.b16 %v580, %v578
    %v607 = vpack.c.b16 %v583, %v581
    %v608 = vpack.c.b16 %v584, %v582
    %v609 = vpack.c.b16 %v587, %v585
    %v610 = vpack.c.b16 %v588, %v586
    %v611 = vpack.c.b16 %v591, %v589
    %v612 = vpack.c.b16 %v592, %v590
    %v613 = vpack.c.b16 %v595, %v593
    %v614 = vpack.c.b16 %v596, %v594
    %v615 = vpack.c.b16 %v599, %v597
    %v616 = vpack.c.b16 %v600, %v598
    %633 = vmatprep.subr.bf16.mxu0 %v602
    %634 = vmatpush1.bf16.msra.mxu0 %v601
    %635 = vmatprep.subr.bf16.mxu0 %v604
    %636 = vmatpush1.bf16.msra.mxu0 %v603
    %637 = vmatprep.subr.bf16.mxu0 %v606
    %638 = vmatpush1.bf16.msra.mxu0 %v605
    %639 = vmatprep.subr.bf16.mxu0 %v608
    %640 = vmatpush1.bf16.msra.mxu0 %v607
    %641 = vmatprep.subr.bf16.mxu0 %v610
    %642 = vmatpush1.bf16.msra.mxu0 %v609
    %643 = vmatprep.subr.bf16.mxu0 %v612
    %644 = vmatpush1.bf16.msra.mxu0 %v611
    %645 = vmatprep.subr.bf16.mxu0 %v614
    %646 = vmatpush1.bf16.msra.mxu0 %v613
    %647 = vmatprep.subr.bf16.mxu0 %v616
    %648 = vmatpush1.bf16.msra.mxu0 %v615
    %649 = vmatprep.subr.bf16.mxu0 0
    %650 = vmatpush1.bf16.msra.mxu0 0
    %651 = vmatprep.subr.bf16.mxu0 0
    %652 = vmatpush1.bf16.msra.mxu0 0
    %653 = vmatprep.subr.bf16.mxu0 0
    %654 = vmatpush1.bf16.msra.mxu0 0
    %655 = vmatprep.subr.bf16.mxu0 0
    %656 = vmatpush1.bf16.msra.mxu0 0
    %657 = vmatprep.subr.bf16.mxu0 0
    %658 = vmatpush1.bf16.msra.mxu0 0
    %659 = vmatprep.subr.bf16.mxu0 0
    %660 = vmatpush1.bf16.msra.mxu0 0
    %661 = vmatprep.subr.bf16.mxu0 0
    %662 = vmatpush1.bf16.msra.mxu0 0
    %663 = vmatprep.subr.bf16.mxu0 0
    %664 = vmatpush1.bf16.msra.mxu0 0
    %665 = vmatprep.mubr.bf16.mxu0 0
    %666 = vmatmul.mubr.bf16.gmra.mrb[0].mxu0 %v524
    %v667 = vpop.f32.mrb[0].mxu0
    %v668 = vadd.f32 %v546, %v667
    %v669 = vpop.f32.mrb[0].mxu0
    %v670 = vadd.f32 %v550, %v669
    %v671 = vpop.f32.mrb[0].mxu0
    %v672 = vpop.f32.mrb[0].mxu0
    %673 = vdwg.mxu0
    %v674 = vsel %vm116, %v105, %v668
    %v675 = vsel %vm117, %v106, %v670
    %676 = vst [vmem:[#allocation11] sm:$0xff] %v674
    %677 = vst [vmem:[#allocation11 + $0x8] sm:$0xff] %v675
    // Predicated region
    $region62: #{tpu_custom_call.1} parent=1 // pred_check
      _
    $region63: #{tpu_custom_call.1} parent=1 // pred_check_branch
      %679 = sbr.rel (0) target = $region65
    $region64: #{tpu_custom_call.1} parent=1 // pred_region
      %s681 = ssub.s32 256, 256
      %682 = vsyncadd [#allocation4], %s681
      %s684 = sshll.u32 [#allocation11], 4
      %s685 = int_to_ptr.vmem [resolvable:$true] %s684
      %687 = dma.vmem_to_hbm [thread:$0]  %s685, 256, %s10, [#allocation4]
    $region65: #{tpu_custom_call.1} parent=1 // pred_fallthru
      _
    // Predicated region
    $region66: #{tpu_custom_call.1} parent=1 // pred_check
      _
    $region67: #{tpu_custom_call.1} parent=1 // pred_check_branch
      %689 = sbr.rel (0) target = $region69
    $region68: #{tpu_custom_call.1} parent=1 // pred_region
      %690 = dma.done [#allocation4], 256
    $region69: #{tpu_custom_call.1} parent=1 // pred_fallthru
      _
    %691 = vsyncpa [#allocation3], 1
    %692 = vsyncpa [#allocation6], 1
    %693 = vsyncpa [#allocation9], 1
    %694 = vsyncpa [#allocation4], 1

// kernel: tpu_custom_call.1
$region0: #{tpu_custom_call.1}
  #allocation0 [shape = 'u32[]', space=smem, size = 0x4, offset = 0x4, fixed_abs, tag = 'smem constant byte address 0x4 - core index']
  #allocation1 [shape = 'u32[144,128]{1,0:T(1,128)}', space=vmem, size = 0x12000, scoped, tag = 'internal scratch']
  %s0 = inlined_call_operand.hbm [shape: f32[8,256], index: 0, kind: input, shape index: {}]
  %s1 = inlined_call_operand.vmem [shape: f32[1,256], index: 1, kind: input, shape index: {}]
  %s2 = inlined_call_operand.hbm [shape: bf16[256,128], index: 2, kind: input, shape index: {}]
  %s3 = inlined_call_operand.vmem [shape: f32[1,128], index: 3, kind: input, shape index: {}]
  %s4 = inlined_call_operand.hbm [shape: bf16[128,128], index: 4, kind: input, shape index: {}]
  %s5 = inlined_call_operand.vmem [shape: f32[1,128], index: 5, kind: input, shape index: {}]
  %s6 = inlined_call_operand.hbm [shape: bf16[128,128], index: 6, kind: input, shape index: {}]
  %s7 = inlined_call_operand.vmem [shape: f32[1,128], index: 7, kind: input, shape index: {}]
  %s8 = inlined_call_operand.hbm [shape: bf16[128,256], index: 8, kind: input, shape index: {}]
  %s9 = inlined_call_operand.vmem [shape: f32[1,256], index: 9, kind: input, shape index: {}]
  %s10 = inlined_call_operand.hbm [shape: f32[8,256], index: 10, kind: output, shape index: {}]
  %s11 = sld [smem:[#allocation0]]
  $region70: #{tpu_custom_call.1} parent=0
    _
  %s13 = ssub.s32 1, %s11
  %s14 = scalar_select 0, %s13, %s11
  $region1: #{tpu_custom_call.1} parent=0
    #allocation2 [shape = 'u8[8192]{0}', space=vmem, size = 0x2000, scoped, tag = 'input window, operand 0, single buffered']
    #allocation3 [shape = 's32[1]{0}', space=sflag, size = 0x4, scoped, tag = 'scoped memory for tpu_custom_call.1']
    #allocation4 [shape = 's32[1]{0}', space=sflag, size = 0x4, scoped, tag = 'scoped memory for tpu_custom_call.1']
    #allocation5 [shape = 'u8[65536]{0}', space=vmem, size = 0x10000, scoped, tag = 'input window, operand 2, single buffered']
    #allocation6 [shape = 's32[1]{0}', space=sflag, size = 0x4, scoped, tag = 'scoped memory for tpu_custom_call.1']
    #allocation7 [shape = 'u8[32768]{0}', space=vmem, size = 0x8000, scoped, tag = 'input window, operand 4, single buffered']
    #allocation8 [shape = 'u8[32768]{0}', space=vmem, size = 0x8000, scoped, tag = 'input window, operand 6, single buffered']
    #allocation9 [shape = 's32[1]{0}', space=sflag, size = 0x4, scoped, tag = 'scoped memory for tpu_custom_call.1']
    #allocation10 [shape = 'u8[65536]{0}', space=vmem, size = 0x10000, scoped, tag = 'input window, operand 8, single buffered']
    #allocation11 [shape = 'u8[8192]{0}', space=vmem, size = 0x2000, scoped, tag = 'output window, operand 0, single buffered']
    %15 = vsyncpa [#allocation3], 0
    %16 = vsyncpa [#allocation6], 0
    %17 = vsyncpa [#allocation9], 0
    %18 = vsyncpa [#allocation4], 0
    // Predicated region
    $region2: #{tpu_custom_call.1} parent=1 // pred_check
      _
    $region3: #{tpu_custom_call.1} parent=1 // pred_check_branch
      %20 = sbr.rel (0) target = $region5
    $region4: #{tpu_custom_call.1} parent=1 // pred_region
      %s22 = ssub.s32 256, 256
      %23 = vsyncadd [#allocation3], %s22
      %s25 = sshll.u32 [#allocation2], 4
      %s26 = int_to_ptr.vmem [resolvable:$true] %s25
      %28 = dma.hbm_to_vmem [thread:$0]  %s0, 256, %s26, [#allocation3]
    $region5: #{tpu_custom_call.1} parent=1 // pred_fallthru
      _
    // Predicated region
    $region6: #{tpu_custom_call.1} parent=1 // pred_check
      _
    $region7: #{tpu_custom_call.1} parent=1 // pred_check_branch
      %30 = sbr.rel (0) target = $region9
    $region8: #{tpu_custom_call.1} parent=1 // pred_region
      _
    $region9: #{tpu_custom_call.1} parent=1 // pred_fallthru
      _
    // Predicated region
    $region10: #{tpu_custom_call.1} parent=1 // pred_check
      _
    $region11: #{tpu_custom_call.1} parent=1 // pred_check_branch
      %32 = sbr.rel (0) target = $region13
    $region12: #{tpu_custom_call.1} parent=1 // pred_region
      %s34 = ssub.s32 2048, 2048
      %35 = vsyncadd [#allocation6], %s34
      %s36 = sshll.u32 [#allocation5], 4
      %s37 = int_to_ptr.vmem [resolvable:$true] %s36
      %42 = dma.hbm_to_vmem [thread:$0]  %s2, 2048, %s37, [#allocation6], 64, 64, 4
    $region13: #{tpu_custom_call.1} parent=1 // pred_fallthru
      _
    // Predicated region
    $region14: #{tpu_custom_call.1} parent=1 // pred_check
      _
    $region15: #{tpu_custom_call.1} parent=1 // pred_check_branch
      %44 = sbr.rel (0) target = $region17
    $region16: #{tpu_custom_call.1} parent=1 // pred_region
      _
    $region17: #{tpu_custom_call.1} parent=1 // pred_fallthru
      _
    // Predicated region
    $region18: #{tpu_custom_call.1} parent=1 // pred_check
      _
    $region19: #{tpu_custom_call.1} parent=1 // pred_check_branch
      %46 = sbr.rel (0) target = $region21
    $region20: #{tpu_custom_call.1} parent=1 // pred_region
      %s48 = ssub.s32 1024, 1024
      %49 = vsyncadd [#allocation6], %s48
      %s50 = sshll.u32 [#allocation7], 4
      %s51 = int_to_ptr.vmem [resolvable:$true] %s50
      %56 = dma.hbm_to_vmem [thread:$0]  %s4, 1024, %s51, [#allocation6], 64, 64, 4
    $region21: #{tpu_custom_call.1} parent=1 // pred_fallthru
      _
    // Predicated region
    $region22: #{tpu_custom_call.1} parent=1 // pred_check
      _
    $region23: #{tpu_custom_call.1} parent=1 // pred_check_branch
      %58 = sbr.rel (0) target = $region25
    $region24: #{tpu_custom_call.1} parent=1 // pred_region
      _
    $region25: #{tpu_custom_call.1} parent=1 // pred_fallthru
      _
    // Predicated region
    $region26: #{tpu_custom_call.1} parent=1 // pred_check
      _
    $region27: #{tpu_custom_call.1} parent=1 // pred_check_branch
      %60 = sbr.rel (0) target = $region29
    $region28: #{tpu_custom_call.1} parent=1 // pred_region
      %s62 = ssub.s32 1024, 1024
      %63 = vsyncadd [#allocation9], %s62
      %s64 = sshll.u32 [#allocation8], 4
      %s65 = int_to_ptr.vmem [resolvable:$true] %s64
      %70 = dma.hbm_to_vmem [thread:$0]  %s6, 1024, %s65, [#allocation9], 64, 64, 4
    $region29: #{tpu_custom_call.1} parent=1 // pred_fallthru
      _
    // Predicated region
    $region30: #{tpu_custom_call.1} parent=1 // pred_check
      _
    $region31: #{tpu_custom_call.1} parent=1 // pred_check_branch
      %72 = sbr.rel (0) target = $region33
    $region32: #{tpu_custom_call.1} parent=1 // pred_region
      _
    $region33: #{tpu_custom_call.1} parent=1 // pred_fallthru
      _
    // Predicated region
    $region34: #{tpu_custom_call.1} parent=1 // pred_check
      _
    $region35: #{tpu_custom_call.1} parent=1 // pred_check_branch
      %74 = sbr.rel (0) target = $region37
    $region36: #{tpu_custom_call.1} parent=1 // pred_region
      %s76 = ssub.s32 2048, 2048
      %77 = vsyncadd [#allocation9], %s76
      %s78 = sshll.u32 [#allocation10], 4
      %s79 = int_to_ptr.vmem [resolvable:$true] %s78
      %84 = dma.hbm_to_vmem [thread:$0]  %s8, 2048, %s79, [#allocation9], 128, 128, 8
    $region37: #{tpu_custom_call.1} parent=1 // pred_fallthru
      _
    // Predicated region
    $region38: #{tpu_custom_call.1} parent=1 // pred_check
      _
    $region39: #{tpu_custom_call.1} parent=1 // pred_check_branch
      %86 = sbr.rel (0) target = $region41
    $region40: #{tpu_custom_call.1} parent=1 // pred_region
      _
    $region41: #{tpu_custom_call.1} parent=1 // pred_fallthru
      _
    // Predicated region
    $region42: #{tpu_custom_call.1} parent=1 // pred_check
      _
    $region43: #{tpu_custom_call.1} parent=1 // pred_check_branch
      %88 = sbr.rel (0) target = $region45
    $region44: #{tpu_custom_call.1} parent=1 // pred_region
      %89 = dma.done [#allocation3], 256
    $region45: #{tpu_custom_call.1} parent=1 // pred_fallthru
      _
    // Predicated region
    $region46: #{tpu_custom_call.1} parent=1 // pred_check
      _
    $region47: #{tpu_custom_call.1} parent=1 // pred_check_branch
      %91 = sbr.rel (0) target = $region49
    $region48: #{tpu_custom_call.1} parent=1 // pred_region
      %92 = dma.done [#allocation6], 2048
    $region49: #{tpu_custom_call.1} parent=1 // pred_fallthru
      _
    // Predicated region
    $region50: #{tpu_custom_call.1} parent=1 // pred_check
      _
    $region51: #{tpu_custom_call.1} parent=1 // pred_check_branch
      %94 = sbr.rel (0) target = $region53
    $region52: #{tpu_custom_call.1} parent=1 // pred_region
      %95 = dma.done [#allocation6], 1024
    $region53: #{tpu_custom_call.1} parent=1 // pred_fallthru
      _
    // Predicated region
    $region54: #{tpu_custom_call.1} parent=1 // pred_check
      _
    $region55: #{tpu_custom_call.1} parent=1 // pred_check_branch
      %97 = sbr.rel (0) target = $region57
    $region56: #{tpu_custom_call.1} parent=1 // pred_region
      %98 = dma.done [#allocation9], 1024
    $region57: #{tpu_custom_call.1} parent=1 // pred_fallthru
      _
    // Predicated region
    $region58: #{tpu_custom_call.1} parent=1 // pred_check
      _
    $region59: #{tpu_custom_call.1} parent=1 // pred_check_branch
      %100 = sbr.rel (0) target = $region61
    $region60: #{tpu_custom_call.1} parent=1 // pred_region
      %101 = dma.done [#allocation9], 2048
    $region61: #{tpu_custom_call.1} parent=1 // pred_fallthru
      _
    %v103 = vld [vmem:[%s1] sm:$0x3]
    %vm104 = vcmp.gt.f32.partialorder %v103, 0.5
    %v105 = vld [vmem:[#allocation2] sm:$0xff]
    %v106 = vld [vmem:[#allocation2 + $0x8] sm:$0xff]
    %v107 = vsel %vm104, 1, 0
    %v108 = vlaneseq
    %v109 = vshrl.u32 %v108, 7
    %v110 = vsub.s32 0, %v109
    %v111 = vrot.slane %v107, %v110
    %v112 = vlaneseq
    %v113 = vshrl.u32 %v112, 7
    %v114 = vsub.s32 1, %v113
    %v115 = vrot.slane %v107, %v114
    %vm116 = vcmp.eq.s32.totalorder %v111, 1
    %vm117 = vcmp.eq.s32.totalorder %v115, 1
    %v118 = vsel %vm116, 0.0, %v105
    %v119 = vsel %vm117, 0.0, %v106
    %v120 = vpack.c.bf16 %v118, %v118
    %v121 = vpack.c.bf16 %v119, %v119
    %v122 = vld [vmem:[#allocation5] sm:$0xf]
    %v123 = vld [vmem:[#allocation5 + $0x4] sm:$0xf]
    %v124 = vld [vmem:[#allocation5 + $0x8] sm:$0xf]
    %v125 = vld [vmem:[#allocation5 + $0xc] sm:$0xf]
    %v126 = vld [vmem:[#allocation5 + $0x10] sm:$0xf]
    %v127 = vld [vmem:[#allocation5 + $0x14] sm:$0xf]
    %v128 = vld [vmem:[#allocation5 + $0x18] sm:$0xf]
    %v129 = vld [vmem:[#allocation5 + $0x1c] sm:$0xf]
    %v130 = vld [vmem:[#allocation5 + $0x20] sm:$0xf]
    %v131 = vld [vmem:[#allocation5 + $0x24] sm:$0xf]
    %v132 = vld [vmem:[#allocation5 + $0x28] sm:$0xf]
    %v133 = vld [vmem:[#allocation5 + $0x2c] sm:$0xf]
    %v134 = vld [vmem:[#allocation5 + $0x30] sm:$0xf]
    %v135 = vld [vmem:[#allocation5 + $0x34] sm:$0xf]
    %v136 = vld [vmem:[#allocation5 + $0x38] sm:$0xf]
    %v137 = vld [vmem:[#allocation5 + $0x3c] sm:$0xf]
    %v138 = vld [vmem:[#allocation5 + $0x40] sm:$0xf]
    %v139 = vld [vmem:[#allocation5 + $0x44] sm:$0xf]
    %v140 = vld [vmem:[#allocation5 + $0x48] sm:$0xf]
    %v141 = vld [vmem:[#allocation5 + $0x4c] sm:$0xf]
    %v142 = vld [vmem:[#allocation5 + $0x50] sm:$0xf]
    %v143 = vld [vmem:[#allocation5 + $0x54] sm:$0xf]
    %v144 = vld [vmem:[#allocation5 + $0x58] sm:$0xf]
    %v145 = vld [vmem:[#allocation5 + $0x5c] sm:$0xf]
    %v146 = vld [vmem:[#allocation5 + $0x60] sm:$0xf]
    %v147 = vld [vmem:[#allocation5 + $0x64] sm:$0xf]
    %v148 = vld [vmem:[#allocation5 + $0x68] sm:$0xf]
    %v149 = vld [vmem:[#allocation5 + $0x6c] sm:$0xf]
    %v150 = vld [vmem:[#allocation5 + $0x70] sm:$0xf]
    %v151 = vld [vmem:[#allocation5 + $0x74] sm:$0xf]
    %v152 = vld [vmem:[#allocation5 + $0x78] sm:$0xf]
    %v153 = vld [vmem:[#allocation5 + $0x7c] sm:$0xf]
    %v154 = vld [vmem:[%s3] sm:$0x1]
    %v156 = vlaneseq
    %v157 = vshrl.u32 %v156, 7
    %v158 = vsub.s32 0, %v157
    %v159 = vrot.slane %v154, %v158
    %v193 = vunpack.c.l.b16 %v122
    %v194 = vunpack.c.l.b16 %v123
    %v195 = vunpack.c.l.b16 %v124
    %v196 = vunpack.c.l.b16 %v125
    %v197 = vunpack.c.l.b16 %v126
    %v198 = vunpack.c.l.b16 %v127
    %v199 = vunpack.c.l.b16 %v128
    %v200 = vunpack.c.l.b16 %v129
    %v201 = vunpack.c.l.b16 %v130
    %v202 = vunpack.c.l.b16 %v131
    %v203 = vunpack.c.l.b16 %v132
    %v204 = vunpack.c.l.b16 %v133
    %v205 = vunpack.c.l.b16 %v134
    %v206 = vunpack.c.l.b16 %v135
    %v207 = vunpack.c.l.b16 %v136
    %v208 = vunpack.c.l.b16 %v137
    %v209 = vunpack.c.l.b16 %v138
    %v210 = vunpack.c.l.b16 %v139
    %v211 = vunpack.c.l.b16 %v140
    %v212 = vunpack.c.l.b16 %v141
    %v213 = vunpack.c.l.b16 %v142
    %v214 = vunpack.c.l.b16 %v143
    %v215 = vunpack.c.l.b16 %v144
    %v216 = vunpack.c.l.b16 %v145
    %v217 = vunpack.c.l.b16 %v146
    %v218 = vunpack.c.l.b16 %v147
    %v219 = vunpack.c.l.b16 %v148
    %v220 = vunpack.c.l.b16 %v149
    %v221 = vunpack.c.l.b16 %v150
    %v222 = vunpack.c.l.b16 %v151
    %v223 = vunpack.c.l.b16 %v152
    %v224 = vunpack.c.l.b16 %v153
    %v225 = vpack.c.b16 %v194, %v193
    %v226 = vpack.c.b16 %v196, %v195
    %v227 = vpack.c.b16 %v198, %v197
    %v228 = vpack.c.b16 %v200, %v199
    %v229 = vpack.c.b16 %v202, %v201
    %v230 = vpack.c.b16 %v204, %v203
    %v231 = vpack.c.b16 %v206, %v205
    %v232 = vpack.c.b16 %v208, %v207
    %v233 = vpack.c.b16 %v210, %v209
    %v234 = vpack.c.b16 %v212, %v211
    %v235 = vpack.c.b16 %v214, %v213
    %v236 = vpack.c.b16 %v216, %v215
    %v237 = vpack.c.b16 %v218, %v217
    %v238 = vpack.c.b16 %v220, %v219
    %v239 = vpack.c.b16 %v222, %v221
    %v240 = vpack.c.b16 %v224, %v223
    %257 = vmatprep.subr.bf16.mxu0 0
    %258 = vmatpush1.bf16.msra.mxu0 %v225
    %259 = vmatprep.subr.bf16.mxu0 0
    %260 = vmatpush1.bf16.msra.mxu0 %v226
    %261 = vmatprep.subr.bf16.mxu0 0
    %262 = vmatpush1.bf16.msra.mxu0 %v227
    %263 = vmatprep.subr.bf16.mxu0 0
    %264 = vmatpush1.bf16.msra.mxu0 %v228
    %265 = vmatprep.subr.bf16.mxu0 0
    %266 = vmatpush1.bf16.msra.mxu0 %v229
    %267 = vmatprep.subr.bf16.mxu0 0
    %268 = vmatpush1.bf16.msra.mxu0 %v230
    %269 = vmatprep.subr.bf16.mxu0 0
    %270 = vmatpush1.bf16.msra.mxu0 %v231
    %271 = vmatprep.subr.bf16.mxu0 0
    %272 = vmatpush1.bf16.msra.mxu0 %v232
    %273 = vmatprep.subr.bf16.mxu0 0
    %274 = vmatpush1.bf16.msra.mxu0 %v233
    %275 = vmatprep.subr.bf16.mxu0 0
    %276 = vmatpush1.bf16.msra.mxu0 %v234
    %277 = vmatprep.subr.bf16.mxu0 0
    %278 = vmatpush1.bf16.msra.mxu0 %v235
    %279 = vmatprep.subr.bf16.mxu0 0
    %280 = vmatpush1.bf16.msra.mxu0 %v236
    %281 = vmatprep.subr.bf16.mxu0 0
    %282 = vmatpush1.bf16.msra.mxu0 %v237
    %283 = vmatprep.subr.bf16.mxu0 0
    %284 = vmatpush1.bf16.msra.mxu0 %v238
    %285 = vmatprep.subr.bf16.mxu0 0
    %286 = vmatpush1.bf16.msra.mxu0 %v239
    %287 = vmatprep.subr.bf16.mxu0 0
    %288 = vmatpush1.bf16.msra.mxu0 %v240
    %289 = vmatprep.mubr.bf16.mxu0 %v121
    %290 = vmatmul.mubr.bf16.gmra.mrb[0].mxu0 %v120
    %v291 = vpop.f32.mrb[0].mxu0
    %v292 = vadd.f32 %v159, %v291
    %v293 = vpop.f32.mrb[0].mxu0
    %v294 = vpop.f32.mrb[0].mxu0
    %v295 = vpop.f32.mrb[0].mxu0
    %296 = vdwg.mxu0
    %v297 = vmax.f32 %v292, 0.0
    %v298 = vpack.c.bf16 %v297, %v297
    %v299 = vld [vmem:[#allocation7] sm:$0xf]
    %v300 = vld [vmem:[#allocation7 + $0x4] sm:$0xf]
    %v301 = vld [vmem:[#allocation7 + $0x8] sm:$0xf]
    %v302 = vld [vmem:[#allocation7 + $0xc] sm:$0xf]
    %v303 = vld [vmem:[#allocation7 + $0x10] sm:$0xf]
    %v304 = vld [vmem:[#allocation7 + $0x14] sm:$0xf]
    %v305 = vld [vmem:[#allocation7 + $0x18] sm:$0xf]
    %v306 = vld [vmem:[#allocation7 + $0x1c] sm:$0xf]
    %v307 = vld [vmem:[#allocation7 + $0x20] sm:$0xf]
    %v308 = vld [vmem:[#allocation7 + $0x24] sm:$0xf]
    %v309 = vld [vmem:[#allocation7 + $0x28] sm:$0xf]
    %v310 = vld [vmem:[#allocation7 + $0x2c] sm:$0xf]
    %v311 = vld [vmem:[#allocation7 + $0x30] sm:$0xf]
    %v312 = vld [vmem:[#allocation7 + $0x34] sm:$0xf]
    %v313 = vld [vmem:[#allocation7 + $0x38] sm:$0xf]
    %v314 = vld [vmem:[#allocation7 + $0x3c] sm:$0xf]
    %v315 = vld [vmem:[%s5] sm:$0x1]
    %v317 = vlaneseq
    %v318 = vshrl.u32 %v317, 7
    %v319 = vsub.s32 0, %v318
    %v320 = vrot.slane %v315, %v319
    %v338 = vunpack.c.l.b16 %v299
    %v339 = vunpack.c.l.b16 %v300
    %v340 = vunpack.c.l.b16 %v301
    %v341 = vunpack.c.l.b16 %v302
    %v342 = vunpack.c.l.b16 %v303
    %v343 = vunpack.c.l.b16 %v304
    %v344 = vunpack.c.l.b16 %v305
    %v345 = vunpack.c.l.b16 %v306
    %v346 = vunpack.c.l.b16 %v307
    %v347 = vunpack.c.l.b16 %v308
    %v348 = vunpack.c.l.b16 %v309
    %v349 = vunpack.c.l.b16 %v310
    %v350 = vunpack.c.l.b16 %v311
    %v351 = vunpack.c.l.b16 %v312
    %v352 = vunpack.c.l.b16 %v313
    %v353 = vunpack.c.l.b16 %v314
    %v354 = vpack.c.b16 %v339, %v338
    %v355 = vpack.c.b16 %v341, %v340
    %v356 = vpack.c.b16 %v343, %v342
    %v357 = vpack.c.b16 %v345, %v344
    %v358 = vpack.c.b16 %v347, %v346
    %v359 = vpack.c.b16 %v349, %v348
    %v360 = vpack.c.b16 %v351, %v350
    %v361 = vpack.c.b16 %v353, %v352
    %370 = vmatprep.subr.bf16.mxu0 0
    %371 = vmatpush1.bf16.msra.mxu0 %v354
    %372 = vmatprep.subr.bf16.mxu0 0
    %373 = vmatpush1.bf16.msra.mxu0 %v355
    %374 = vmatprep.subr.bf16.mxu0 0
    %375 = vmatpush1.bf16.msra.mxu0 %v356
    %376 = vmatprep.subr.bf16.mxu0 0
    %377 = vmatpush1.bf16.msra.mxu0 %v357
    %378 = vmatprep.subr.bf16.mxu0 0
    %379 = vmatpush1.bf16.msra.mxu0 %v358
    %380 = vmatprep.subr.bf16.mxu0 0
    %381 = vmatpush1.bf16.msra.mxu0 %v359
    %382 = vmatprep.subr.bf16.mxu0 0
    %383 = vmatpush1.bf16.msra.mxu0 %v360
    %384 = vmatprep.subr.bf16.mxu0 0
    %385 = vmatpush1.bf16.msra.mxu0 %v361
    %386 = vmatprep.subr.bf16.mxu0 0
    %387 = vmatpush1.bf16.msra.mxu0 0
    %388 = vmatprep.subr.bf16.mxu0 0
    %389 = vmatpush1.bf16.msra.mxu0 0
    %390 = vmatprep.subr.bf16.mxu0 0
    %391 = vmatpush1.bf16.msra.mxu0 0
    %392 = vmatprep.subr.bf16.mxu0 0
    %393 = vmatpush1.bf16.msra.mxu0 0
    %394 = vmatprep.subr.bf16.mxu0 0
    %395 = vmatpush1.bf16.msra.mxu0 0
    %396 = vmatprep.subr.bf16.mxu0 0
    %397 = vmatpush1.bf16.msra.mxu0 0
    %398 = vmatprep.subr.bf16.mxu0 0
    %399 = vmatpush1.bf16.msra.mxu0 0
    %400 = vmatprep.subr.bf16.mxu0 0
    %401 = vmatpush1.bf16.msra.mxu0 0
    %402 = vmatprep.mubr.bf16.mxu0 0
    %403 = vmatmul.mubr.bf16.gmra.mrb[0].mxu0 %v298
    %v404 = vpop.f32.mrb[0].mxu0
    %v405 = vadd.f32 %v320, %v404
    %v406 = vpop.f32.mrb[0].mxu0
    %v407 = vpop.f32.mrb[0].mxu0
    %v408 = vpop.f32.mrb[0].mxu0
    %409 = vdwg.mxu0
    %v410 = vmax.f32 %v405, 0.0
    %v411 = vpack.c.bf16 %v410, %v410
    %v412 = vld [vmem:[#allocation8] sm:$0xf]
    %v413 = vld [vmem:[#allocation8 + $0x4] sm:$0xf]
    %v414 = vld [vmem:[#allocation8 + $0x8] sm:$0xf]
    %v415 = vld [vmem:[#allocation8 + $0xc] sm:$0xf]
    %v416 = vld [vmem:[#allocation8 + $0x10] sm:$0xf]
    %v417 = vld [vmem:[#allocation8 + $0x14] sm:$0xf]
    %v418 = vld [vmem:[#allocation8 + $0x18] sm:$0xf]
    %v419 = vld [vmem:[#allocation8 + $0x1c] sm:$0xf]
    %v420 = vld [vmem:[#allocation8 + $0x20] sm:$0xf]
    %v421 = vld [vmem:[#allocation8 + $0x24] sm:$0xf]
    %v422 = vld [vmem:[#allocation8 + $0x28] sm:$0xf]
    %v423 = vld [vmem:[#allocation8 + $0x2c] sm:$0xf]
    %v424 = vld [vmem:[#allocation8 + $0x30] sm:$0xf]
    %v425 = vld [vmem:[#allocation8 + $0x34] sm:$0xf]
    %v426 = vld [vmem:[#allocation8 + $0x38] sm:$0xf]
    %v427 = vld [vmem:[#allocation8 + $0x3c] sm:$0xf]
    %v428 = vld [vmem:[%s7] sm:$0x1]
    %v430 = vlaneseq
    %v431 = vshrl.u32 %v430, 7
    %v432 = vsub.s32 0, %v431
    %v433 = vrot.slane %v428, %v432
    %v451 = vunpack.c.l.b16 %v412
    %v452 = vunpack.c.l.b16 %v413
    %v453 = vunpack.c.l.b16 %v414
    %v454 = vunpack.c.l.b16 %v415
    %v455 = vunpack.c.l.b16 %v416
    %v456 = vunpack.c.l.b16 %v417
    %v457 = vunpack.c.l.b16 %v418
    %v458 = vunpack.c.l.b16 %v419
    %v459 = vunpack.c.l.b16 %v420
    %v460 = vunpack.c.l.b16 %v421
    %v461 = vunpack.c.l.b16 %v422
    %v462 = vunpack.c.l.b16 %v423
    %v463 = vunpack.c.l.b16 %v424
    %v464 = vunpack.c.l.b16 %v425
    %v465 = vunpack.c.l.b16 %v426
    %v466 = vunpack.c.l.b16 %v427
    %v467 = vpack.c.b16 %v452, %v451
    %v468 = vpack.c.b16 %v454, %v453
    %v469 = vpack.c.b16 %v456, %v455
    %v470 = vpack.c.b16 %v458, %v457
    %v471 = vpack.c.b16 %v460, %v459
    %v472 = vpack.c.b16 %v462, %v461
    %v473 = vpack.c.b16 %v464, %v463
    %v474 = vpack.c.b16 %v466, %v465
    %483 = vmatprep.subr.bf16.mxu0 0
    %484 = vmatpush1.bf16.msra.mxu0 %v467
    %485 = vmatprep.subr.bf16.mxu0 0
    %486 = vmatpush1.bf16.msra.mxu0 %v468
    %487 = vmatprep.subr.bf16.mxu0 0
    %488 = vmatpush1.bf16.msra.mxu0 %v469
    %489 = vmatprep.subr.bf16.mxu0 0
    %490 = vmatpush1.bf16.msra.mxu0 %v470
    %491 = vmatprep.subr.bf16.mxu0 0
    %492 = vmatpush1.bf16.msra.mxu0 %v471
    %493 = vmatprep.subr.bf16.mxu0 0
    %494 = vmatpush1.bf16.msra.mxu0 %v472
    %495 = vmatprep.subr.bf16.mxu0 0
    %496 = vmatpush1.bf16.msra.mxu0 %v473
    %497 = vmatprep.subr.bf16.mxu0 0
    %498 = vmatpush1.bf16.msra.mxu0 %v474
    %499 = vmatprep.subr.bf16.mxu0 0
    %500 = vmatpush1.bf16.msra.mxu0 0
    %501 = vmatprep.subr.bf16.mxu0 0
    %502 = vmatpush1.bf16.msra.mxu0 0
    %503 = vmatprep.subr.bf16.mxu0 0
    %504 = vmatpush1.bf16.msra.mxu0 0
    %505 = vmatprep.subr.bf16.mxu0 0
    %506 = vmatpush1.bf16.msra.mxu0 0
    %507 = vmatprep.subr.bf16.mxu0 0
    %508 = vmatpush1.bf16.msra.mxu0 0
    %509 = vmatprep.subr.bf16.mxu0 0
    %510 = vmatpush1.bf16.msra.mxu0 0
    %511 = vmatprep.subr.bf16.mxu0 0
    %512 = vmatpush1.bf16.msra.mxu0 0
    %513 = vmatprep.subr.bf16.mxu0 0
    %514 = vmatpush1.bf16.msra.mxu0 0
    %515 = vmatprep.mubr.bf16.mxu0 0
    %516 = vmatmul.mubr.bf16.gmra.mrb[0].mxu0 %v411
    %v517 = vpop.f32.mrb[0].mxu0
    %v518 = vadd.f32 %v433, %v517
    %v519 = vpop.f32.mrb[0].mxu0
    %v520 = vpop.f32.mrb[0].mxu0
    %v521 = vpop.f32.mrb[0].mxu0
    %522 = vdwg.mxu0
    %v523 = vmax.f32 %v518, 0.0
    %v524 = vpack.c.bf16 %v523, %v523
    %v525 = vld [vmem:[#allocation10] sm:$0xff]
    %v526 = vld [vmem:[#allocation10 + $0x8] sm:$0xff]
    %v527 = vld [vmem:[#allocation10 + $0x10] sm:$0xff]
    %v528 = vld [vmem:[#allocation10 + $0x18] sm:$0xff]
    %v529 = vld [vmem:[#allocation10 + $0x20] sm:$0xff]
    %v530 = vld [vmem:[#allocation10 + $0x28] sm:$0xff]
    %v531 = vld [vmem:[#allocation10 + $0x30] sm:$0xff]
    %v532 = vld [vmem:[#allocation10 + $0x38] sm:$0xff]
    %v533 = vld [vmem:[#allocation10 + $0x40] sm:$0xff]
    %v534 = vld [vmem:[#allocation10 + $0x48] sm:$0xff]
    %v535 = vld [vmem:[#allocation10 + $0x50] sm:$0xff]
    %v536 = vld [vmem:[#allocation10 + $0x58] sm:$0xff]
    %v537 = vld [vmem:[#allocation10 + $0x60] sm:$0xff]
    %v538 = vld [vmem:[#allocation10 + $0x68] sm:$0xff]
    %v539 = vld [vmem:[#allocation10 + $0x70] sm:$0xff]
    %v540 = vld [vmem:[#allocation10 + $0x78] sm:$0xff]
    %v541 = vld [vmem:[%s9] sm:$0x3]
    %v543 = vlaneseq
    %v544 = vshrl.u32 %v543, 7
    %v545 = vsub.s32 0, %v544
    %v546 = vrot.slane %v541, %v545
    %v547 = vlaneseq
    %v548 = vshrl.u32 %v547, 7
    %v549 = vsub.s32 1, %v548
    %v550 = vrot.slane %v541, %v549
    %v569 = vunpack.c.l.b16 %v525
    %v570 = vunpack.c.h.b16 %v525
    %v571 = vunpack.c.l.b16 %v526
    %v572 = vunpack.c.h.b16 %v526
    %v573 = vunpack.c.l.b16 %v527
    %v574 = vunpack.c.h.b16 %v527
    %v575 = vunpack.c.l.b16 %v528
    %v576 = vunpack.c.h.b16 %v528
    %v577 = vunpack.c.l.b16 %v529
    %v578 = vunpack.c.h.b16 %v529
    %v579 = vunpack.c.l.b16 %v530
    %v580 = vunpack.c.h.b16 %v530
    %v581 = vunpack.c.l.b16 %v531
    %v582 = vunpack.c.h.b16 %v531
    %v583 = vunpack.c.l.b16 %v532
    %v584 = vunpack.c.h.b16 %v532
    %v585 = vunpack.c.l.b16 %v533
    %v586 = vunpack.c.h.b16 %v533
    %v587 = vunpack.c.l.b16 %v534
    %v588 = vunpack.c.h.b16 %v534
    %v589 = vunpack.c.l.b16 %v535
    %v590 = vunpack.c.h.b16 %v535
    %v591 = vunpack.c.l.b16 %v536
    %v592 = vunpack.c.h.b16 %v536
    %v593 = vunpack.c.l.b16 %v537
    %v594 = vunpack.c.h.b16 %v537
    %v595 = vunpack.c.l.b16 %v538
    %v596 = vunpack.c.h.b16 %v538
    %v597 = vunpack.c.l.b16 %v539
    %v598 = vunpack.c.h.b16 %v539
    %v599 = vunpack.c.l.b16 %v540
    %v600 = vunpack.c.h.b16 %v540
    %v601 = vpack.c.b16 %v571, %v569
    %v602 = vpack.c.b16 %v572, %v570
    %v603 = vpack.c.b16 %v575, %v573
    %v604 = vpack.c.b16 %v576, %v574
    %v605 = vpack.c.b16 %v579, %v577
    %v606 = vpack.c.b16 %v580, %v578
    %v607 = vpack.c.b16 %v583, %v581
    %v608 = vpack.c.b16 %v584, %v582
    %v609 = vpack.c.b16 %v587, %v585
    %v610 = vpack.c.b16 %v588, %v586
    %v611 = vpack.c.b16 %v591, %v589
    %v612 = vpack.c.b16 %v592, %v590
    %v613 = vpack.c.b16 %v595, %v593
    %v614 = vpack.c.b16 %v596, %v594
    %v615 = vpack.c.b16 %v599, %v597
    %v616 = vpack.c.b16 %v600, %v598
    %633 = vmatprep.subr.bf16.mxu0 %v602
    %634 = vmatpush1.bf16.msra.mxu0 %v601
    %635 = vmatprep.subr.bf16.mxu0 %v604
    %636 = vmatpush1.bf16.msra.mxu0 %v603
    %637 = vmatprep.subr.bf16.mxu0 %v606
    %638 = vmatpush1.bf16.msra.mxu0 %v605
    %639 = vmatprep.subr.bf16.mxu0 %v608
    %640 = vmatpush1.bf16.msra.mxu0 %v607
    %641 = vmatprep.subr.bf16.mxu0 %v610
    %642 = vmatpush1.bf16.msra.mxu0 %v609
    %643 = vmatprep.subr.bf16.mxu0 %v612
    %644 = vmatpush1.bf16.msra.mxu0 %v611
    %645 = vmatprep.subr.bf16.mxu0 %v614
    %646 = vmatpush1.bf16.msra.mxu0 %v613
    %647 = vmatprep.subr.bf16.mxu0 %v616
    %648 = vmatpush1.bf16.msra.mxu0 %v615
    %649 = vmatprep.subr.bf16.mxu0 0
    %650 = vmatpush1.bf16.msra.mxu0 0
    %651 = vmatprep.subr.bf16.mxu0 0
    %652 = vmatpush1.bf16.msra.mxu0 0
    %653 = vmatprep.subr.bf16.mxu0 0
    %654 = vmatpush1.bf16.msra.mxu0 0
    %655 = vmatprep.subr.bf16.mxu0 0
    %656 = vmatpush1.bf16.msra.mxu0 0
    %657 = vmatprep.subr.bf16.mxu0 0
    %658 = vmatpush1.bf16.msra.mxu0 0
    %659 = vmatprep.subr.bf16.mxu0 0
    %660 = vmatpush1.bf16.msra.mxu0 0
    %661 = vmatprep.subr.bf16.mxu0 0
    %662 = vmatpush1.bf16.msra.mxu0 0
    %663 = vmatprep.subr.bf16.mxu0 0
    %664 = vmatpush1.bf16.msra.mxu0 0
    %665 = vmatprep.mubr.bf16.mxu0 0
    %666 = vmatmul.mubr.bf16.gmra.mrb[0].mxu0 %v524
    %v667 = vpop.f32.mrb[0].mxu0
    %v668 = vadd.f32 %v546, %v667
    %v669 = vpop.f32.mrb[0].mxu0
    %v670 = vadd.f32 %v550, %v669
    %v671 = vpop.f32.mrb[0].mxu0
    %v672 = vpop.f32.mrb[0].mxu0
    %673 = vdwg.mxu0
    %v674 = vsel %vm116, %v105, %v668
    %v675 = vsel %vm117, %v106, %v670
    %676 = vst [vmem:[#allocation11] sm:$0xff] %v674
    %677 = vst [vmem:[#allocation11 + $0x8] sm:$0xff] %v675
    // Predicated region
    $region62: #{tpu_custom_call.1} parent=1 // pred_check
      _
    $region63: #{tpu_custom_call.1} parent=1 // pred_check_branch
      %679 = sbr.rel (0) target = $region65
    $region64: #{tpu_custom_call.1} parent=1 // pred_region
      %s681 = ssub.s32 256, 256
      %682 = vsyncadd [#allocation4], %s681
      %s684 = sshll.u32 [#allocation11], 4
      %s685 = int_to_ptr.vmem [resolvable:$true] %s684
      %687 = dma.vmem_to_hbm [thread:$0]  %s685, 256, %s10, [#allocation4]
    $region65: #{tpu_custom_call.1} parent=1 // pred_fallthru
      _
    // Predicated region
    $region66: #{tpu_custom_call.1} parent=1 // pred_check
      _
    $region67: #{tpu_custom_call.1} parent=1 // pred_check_branch
      %689 = sbr.rel (0) target = $region69
    $region68: #{tpu_custom_call.1} parent=1 // pred_region
      %690 = dma.done [#allocation4], 256
    $region69: #{tpu_custom_call.1} parent=1 // pred_fallthru
      _
    %691 = vsyncpa [#allocation3], 1
    %692 = vsyncpa [#allocation6], 1
    %693 = vsyncpa [#allocation9], 1
    %694 = vsyncpa [#allocation4], 1

</llo_original>
